<compile_context>
chip_gen: v7x
topology: tpu7x:2x2x1
jax: 0.10.0
libtpu: 0.0.40
codegen_flags: <defaults>
</compile_context>

<pallas_src>
import functools

import jax
import jax.numpy as jnp
from jax.experimental import pallas as pl
from jax.experimental.pallas import tpu as pltpu


# ---------------------------------------------------------------------------
# Tiling / chip helpers
# ---------------------------------------------------------------------------
def _round_up(x, m):
    return (x + m - 1) // m * m


def _pick_tile(n, cap):
    """Largest power-of-two multiple of 128 that is <= cap and <= round_up(n, 128)."""
    lim = min(cap, _round_up(n, 128))
    t = 128
    while t * 2 <= lim:
        t *= 2
    return t


def _vmem_capacity_bytes():
    try:
        cap = int(getattr(pltpu.get_tpu_info(), "vmem_capacity_bytes"))
        if cap > 0:
            return cap
    except Exception:
        pass
    return 64 * 1024 * 1024  # conservative default (v7x per-TensorCore)


_VMEM_CAP = _vmem_capacity_bytes()
if _VMEM_CAP >= 100 * 1024 * 1024:       # v5e / v6e: 128 MiB physical VMEM
    _VMEM_LIMIT = 96 * 1024 * 1024
else:                                    # v7x: 64 MiB per TensorCore
    _VMEM_LIMIT = 48 * 1024 * 1024
# int8 adj tiles + streamed x keep 1024x1024 tiles well under even v7x's budget.
_TILE_CAP = 1024


# ---------------------------------------------------------------------------
# Pallas kernel: fused
#   out      = (adj_q @ x) * row_scale            (f32)
#   next     = bf16(out)                          (next layer's MXU input)
#   sum_out  = sum_in + out                       (running layer sum, aliased)
#   adj_q : [Np, Np] int8 (HBM-streamed (tm, tk) tiles, 3-deep buffered)
#   scale : [Np, 1]  f32  per-row dequant scales
#   x     : [Np, D]  bf16 streamed as (tk, D) blocks
# grid = (Np // tm, Np // tk); axis 1 (k) is the reduction axis (last).
# ---------------------------------------------------------------------------
def _spmm_sum_kernel(adj_ref, scale_ref, x_ref, sum_in_ref,
                     out_ref, next_ref, sum_out_ref):
    k = pl.program_id(1)

    @pl.when(k == 0)
    def _():
        out_ref[...] = jnp.zeros_like(out_ref)

    # int8 -> bf16 widen in VMEM (exact for |q| <= 127), MXU matmul, f32 acc
    # directly into the VMEM-resident output block (no scratch).
    a = adj_ref[...].astype(x_ref.dtype)
    out_ref[...] += jnp.dot(a, x_ref[...], preferred_element_type=jnp.float32)

    @pl.when(k == pl.num_programs(1) - 1)
    def _():
        res = out_ref[...] * scale_ref[...]            # per-row dequant (f32)
        out_ref[...] = res
        next_ref[...] = res.astype(next_ref.dtype)     # fused bf16 cast
        sum_out_ref[...] = sum_in_ref[...] + res       # fused running sum


def pallas_spmm_sum(adj_q, row_scale, x_bf16, sum_f32, *, tm, tk):
    """Returns (adj @ x  [f32],  bf16(adj @ x),  sum + adj @ x  [f32])."""
    Np, Np2 = adj_q.shape
    _, D = x_bf16.shape
    assert Np == Np2 and Np % tm == 0 and Np % tk == 0

    n_steps = (Np // tm) * (Np // tk)
    adj_buffers = min(3, max(2, n_steps))   # 3-deep when the grid allows it

    flops = 2 * Np * Np * D
    bytes_accessed = (Np * Np                       # int8 adjacency stream
                      + (Np // tm) * Np * D * 2     # x re-streamed per row-block
                      + Np * D * (4 + 2 + 4 + 4)    # out f32/bf16, sum in/out
                      + Np * 4)                     # row scales

    return pl.pallas_call(
        _spmm_sum_kernel,
        out_shape=(
            jax.ShapeDtypeStruct((Np, D), jnp.float32),    # this layer's ego (f32)
            jax.ShapeDtypeStruct((Np, D), jnp.bfloat16),   # next layer's MXU input
            jax.ShapeDtypeStruct((Np, D), jnp.float32),    # updated running sum
        ),
        grid_spec=pltpu.PrefetchScalarGridSpec(
            num_scalar_prefetch=0,
            grid=(Np // tm, Np // tk),
            in_specs=[
                pl.BlockSpec((tm, tk), lambda i, k: (i, k),
                             pipeline_mode=pl.Buffered(adj_buffers)),  # int8 adj
                pl.BlockSpec((tm, 1), lambda i, k: (i, 0)),            # row scales
                pl.BlockSpec((tk, D), lambda i, k: (k, 0)),            # streamed x
                pl.BlockSpec((tm, D), lambda i, k: (i, 0)),            # running sum in
            ],
            out_specs=[
                pl.BlockSpec((tm, D), lambda i, k: (i, 0)),
                pl.BlockSpec((tm, D), lambda i, k: (i, 0)),
                pl.BlockSpec((tm, D), lambda i, k: (i, 0)),
            ],
        ),
        compiler_params=pltpu.CompilerParams(
            dimension_semantics=("parallel", "arbitrary"),
            vmem_limit_bytes=_VMEM_LIMIT,
        ),
        cost_estimate=pl.CostEstimate(flops=flops, transcendentals=0,
                                      bytes_accessed=bytes_accessed),
        input_output_aliases={3: 2},                   # sum_in -> sum_out
    )(adj_q, row_scale, x_bf16, sum_f32)


# ---------------------------------------------------------------------------
# Adjacency quantization (per-row symmetric int8)
# ---------------------------------------------------------------------------
def quantize_adj_int8(norm_adj):
    row_max = jnp.max(jnp.abs(norm_adj), axis=1, keepdims=True)          # (N, 1)
    scale = jnp.where(row_max > 0, row_max / 127.0, 1.0).astype(jnp.float32)
    q = jnp.clip(jnp.round(norm_adj / scale), -127.0, 127.0).astype(jnp.int8)
    return q, scale


# ---------------------------------------------------------------------------
# LightGCN forward (matches the PyTorch module's propagate())
# ---------------------------------------------------------------------------
@functools.partial(jax.jit, static_argnames=("n_layers",))
def lightgcn_forward(norm_adj, user_emb, item_emb, n_layers):
    n_users = user_emb.shape[0]
    n_items = item_emb.shape[0]
    N = n_users + n_items
    D = user_emb.shape[1]

    tm = _pick_tile(N, _TILE_CAP)
    tk = _pick_tile(N, _TILE_CAP)
    Np = _round_up(N, max(tm, tk))
    pad = Np - N

    ego0 = jnp.concatenate([user_emb, item_emb], axis=0).astype(jnp.float32)

    # Quantize + pad the adjacency ONCE, outside the layer loop.
    adj_q, row_scale = quantize_adj_int8(norm_adj.astype(jnp.float32))
    adj_q = jnp.pad(adj_q, ((0, pad), (0, pad)))
    row_scale = jnp.pad(row_scale, ((0, pad), (0, 0)), constant_values=1.0)

    ego_pad = jnp.pad(ego0, ((0, pad), (0, 0)))
    layer_sum = ego_pad                               # running sum (layer 0), f32
    ego_bf16 = ego_pad.astype(jnp.bfloat16)

    all_embeddings = [ego0]
    for _ in range(n_layers):
        ego_f32, ego_bf16, layer_sum = pallas_spmm_sum(
            adj_q, row_scale, ego_bf16, layer_sum, tm=tm, tk=tk)
        all_embeddings.append(ego_f32[:N])

    mean_embeddings = (layer_sum * (1.0 / (n_layers + 1)))[:N]
    u_g_embeddings = mean_embeddings[:n_users]
    i_g_embeddings = mean_embeddings[n_users:]
    return u_g_embeddings, i_g_embeddings, all_embeddings, mean_embeddings


# ---------------------------------------------------------------------------
# Deterministic parameter / adjacency construction
# ---------------------------------------------------------------------------
def xavier_uniform(key, shape, dtype=jnp.float32):
    fan_in, fan_out = shape[0], shape[1]
    bound = jnp.sqrt(6.0 / (fan_in + fan_out)).astype(dtype)
    return jax.random.uniform(key, shape, dtype, minval=-bound, maxval=bound)


def build_norm_adj(key, n_users, n_items, density=0.05, dtype=jnp.float32):
    """Symmetric-normalized bipartite adjacency D^{-1/2} A D^{-1/2} (dense)."""
    N = n_users + n_items
    r = jax.random.uniform(key, (n_users, n_items))
    inter = (r < density).astype(dtype)
    A = jnp.zeros((N, N), dtype=dtype)
    A = A.at[:n_users, n_users:].set(inter)
    A = A.at[n_users:, :n_users].set(inter.T)
    deg = jnp.sum(A, axis=1)
    d_inv_sqrt = jnp.where(deg > 0, 1.0 / jnp.sqrt(deg), 0.0)
    return (A * d_inv_sqrt[:, None]) * d_inv_sqrt[None, :]


if __name__ == "__main__":
    # Small shapes consistent with the module. D = 128 keeps the output lane-dense.
    n_users, n_items = 112, 144          # N = 256
    emb_size = 128
    n_layers = 3

    key = jax.random.PRNGKey(0)
    k_adj, k_u, k_i = jax.random.split(key, 3)

    norm_adj = build_norm_adj(k_adj, n_users, n_items)
    user_emb = xavier_uniform(k_u, (n_users, emb_size))
    item_emb = xavier_uniform(k_i, (n_items, emb_size))

    u_g, i_g, all_emb, mean_emb = lightgcn_forward(
        norm_adj, user_emb, item_emb, n_layers)
    jax.block_until_ready((u_g, i_g, mean_emb))

    # Reference 1: mimic the kernel's int8-quantized adjacency with bf16 MXU
    # inputs and f32 accumulation (tight tolerance).
    row_max = jnp.max(jnp.abs(norm_adj), axis=1, keepdims=True)
    scale = jnp.where(row_max > 0, row_max / 127.0, 1.0)
    q_bf16 = jnp.clip(jnp.round(norm_adj / scale), -127.0, 127.0).astype(jnp.bfloat16)

    ego = jnp.concatenate([user_emb, item_emb], axis=0)
    ref_all = [ego]
    acc = ego
    for _ in range(n_layers):
        ego = jnp.dot(q_bf16, ego.astype(jnp.bfloat16),
                      preferred_element_type=jnp.float32) * scale
        ref_all.append(ego)
        acc = acc + ego
    ref_mean = acc / (n_layers + 1)

    assert jnp.allclose(mean_emb, ref_mean, atol=2e-4, rtol=2e-3)
    assert jnp.allclose(u_g, ref_mean[:n_users], atol=2e-4, rtol=2e-3)
    assert jnp.allclose(i_g, ref_mean[n_users:], atol=2e-4, rtol=2e-3)
    assert jnp.allclose(all_emb[-1], ref_all[-1], atol=2e-4, rtol=2e-3)

    # Reference 2: pure f32 path (loose tolerance; checks that int8
    # quantization of the adjacency did not break numerics).
    ego = jnp.concatenate([user_emb, item_emb], axis=0)
    acc = ego
    for _ in range(n_layers):
        ego = jnp.dot(norm_adj, ego, precision=jax.lax.Precision.HIGHEST)
        acc = acc + ego
    assert jnp.allclose(mean_emb, acc / (n_layers + 1), atol=2e-2, rtol=5e-2)

    print("KERNEL_OK")
</pallas_src>

<mosaic_0001>
module attributes {stable_mosaic.version = 11 : i64} {
  func.func @_spmm_sum_kernel(%arg0: i32, %arg1: i32, %arg2: memref<256x256xi8, #tpu.memory_space<vmem>>, %arg3: memref<256x1xf32, #tpu.memory_space<vmem>>, %arg4: memref<256x128xbf16, #tpu.memory_space<vmem>>, %arg5: memref<256x128xf32, #tpu.memory_space<vmem>>, %arg6: memref<256x128xf32, #tpu.memory_space<vmem>>, %arg7: memref<256x128xbf16, #tpu.memory_space<vmem>>, %arg8: memref<256x128xf32, #tpu.memory_space<vmem>>) attributes {dimension_semantics = [#tpu.dimension_semantics<parallel>, #tpu.dimension_semantics<arbitrary>], iteration_bounds = array<i64: 1, 1>, scalar_prefetch = 0 : i64, scratch_operands = 0 : i64, tpu.core_type = #tpu.core_type<tc>, window_params = [{pipeline_mode = #tpu.pipeline_mode<double_buffered>, transform_indices = @transform_0, window_bounds = array<i64: 256, 256>}, {transform_indices = @transform_1, window_bounds = array<i64: 256, 1>}, {transform_indices = @transform_2, window_bounds = array<i64: 256, 128>}, {transform_indices = @transform_3, window_bounds = array<i64: 256, 128>}, {transform_indices = @transform_4, window_bounds = array<i64: 256, 128>}, {transform_indices = @transform_5, window_bounds = array<i64: 256, 128>}, {transform_indices = @transform_6, window_bounds = array<i64: 256, 128>}]} {
    %c0_i32 = arith.constant 0 : i32
    %0 = arith.cmpi eq, %arg1, %c0_i32 : i32
    %1 = arith.extui %0 : i1 to i32
    %c0_i32_0 = arith.constant 0 : i32
    %2 = arith.cmpi ne, %1, %c0_i32_0 : i32
    scf.if %2 {
      %cst_10 = arith.constant 0.000000e+00 : f32
      %13 = vector.broadcast %cst_10 : f32 to vector<256x128xf32>
      %c0_11 = arith.constant 0 : index
      %c0_12 = arith.constant 0 : index
      %14 = vector.load %arg6[%c0_11, %c0_12] : memref<256x128xf32, #tpu.memory_space<vmem>>, vector<256x128xf32>
      tpu.vector_store %arg6[%c0_11, %c0_12], %13 {strides = array<i32>} : memref<256x128xf32, #tpu.memory_space<vmem>>, vector<256x128xf32>,
    } else {
    }
    %c0 = arith.constant 0 : index
    %c0_1 = arith.constant 0 : index
    %3 = vector.load %arg2[%c0, %c0_1] : memref<256x256xi8, #tpu.memory_space<vmem>>, vector<256x256xi8>
    %4 = arith.sitofp %3 : vector<256x256xi8> to vector<256x256xbf16>
    %c0_2 = arith.constant 0 : index
    %c0_3 = arith.constant 0 : index
    %5 = vector.load %arg6[%c0_2, %c0_3] : memref<256x128xf32, #tpu.memory_space<vmem>>, vector<256x128xf32>
    %c0_4 = arith.constant 0 : index
    %c0_5 = arith.constant 0 : index
    %6 = vector.load %arg4[%c0_4, %c0_5] : memref<256x128xbf16, #tpu.memory_space<vmem>>, vector<256x128xbf16>
    %cst = arith.constant dense<0.000000e+00> : vector<256x128xf32>
    %7 = tpu.matmul %4, %6, %cst {dimension_numbers = #tpu.dot_dimension_numbers<[1], [0], [0], [1], [0, 0, 1, 1], [], []>} : vector<256x256xbf16>, vector<256x128xbf16>, vector<256x128xf32> -> vector<256x128xf32>
    %8 = arith.addf %5, %7 : vector<256x128xf32>
    %c0_6 = arith.constant 0 : index
    %c0_7 = arith.constant 0 : index
    %9 = vector.load %arg6[%c0_6, %c0_7] : memref<256x128xf32, #tpu.memory_space<vmem>>, vector<256x128xf32>
    tpu.vector_store %arg6[%c0_6, %c0_7], %8 {strides = array<i32>} : memref<256x128xf32, #tpu.memory_space<vmem>>, vector<256x128xf32>,
    %c0_i32_8 = arith.constant 0 : i32
    %10 = arith.cmpi eq, %arg1, %c0_i32_8 : i32
    %11 = arith.extui %10 : i1 to i32
    %c0_i32_9 = arith.constant 0 : i32
    %12 = arith.cmpi ne, %11, %c0_i32_9 : i32
    scf.if %12 {
      %c0_10 = arith.constant 0 : index
      %c0_11 = arith.constant 0 : index
      %13 = vector.load %arg6[%c0_10, %c0_11] : memref<256x128xf32, #tpu.memory_space<vmem>>, vector<256x128xf32>
      %c0_12 = arith.constant 0 : index
      %c0_13 = arith.constant 0 : index
      %14 = vector.load %arg3[%c0_12, %c0_13] : memref<256x1xf32, #tpu.memory_space<vmem>>, vector<256x1xf32>
      %15 = vector.broadcast %14 : vector<256x1xf32> to vector<256x128xf32>
      %16 = arith.mulf %13, %15 : vector<256x128xf32>
      %c0_14 = arith.constant 0 : index
      %c0_15 = arith.constant 0 : index
      %17 = vector.load %arg6[%c0_14, %c0_15] : memref<256x128xf32, #tpu.memory_space<vmem>>, vector<256x128xf32>
      tpu.vector_store %arg6[%c0_14, %c0_15], %16 {strides = array<i32>} : memref<256x128xf32, #tpu.memory_space<vmem>>, vector<256x128xf32>,
      %18 = arith.truncf %16 : vector<256x128xf32> to vector<256x128xbf16>
      %c0_16 = arith.constant 0 : index
      %c0_17 = arith.constant 0 : index
      %19 = vector.load %arg7[%c0_16, %c0_17] : memref<256x128xbf16, #tpu.memory_space<vmem>>, vector<256x128xbf16>
      tpu.vector_store %arg7[%c0_16, %c0_17], %18 {strides = array<i32>} : memref<256x128xbf16, #tpu.memory_space<vmem>>, vector<256x128xbf16>,
      %c0_18 = arith.constant 0 : index
      %c0_19 = arith.constant 0 : index
      %20 = vector.load %arg5[%c0_18, %c0_19] : memref<256x128xf32, #tpu.memory_space<vmem>>, vector<256x128xf32>
      %21 = arith.addf %20, %16 : vector<256x128xf32>
      %c0_20 = arith.constant 0 : index
      %c0_21 = arith.constant 0 : index
      %22 = vector.load %arg8[%c0_20, %c0_21] : memref<256x128xf32, #tpu.memory_space<vmem>>, vector<256x128xf32>
      tpu.vector_store %arg8[%c0_20, %c0_21], %21 {strides = array<i32>} : memref<256x128xf32, #tpu.memory_space<vmem>>, vector<256x128xf32>,
    } else {
    }
    return
  }
  func.func @transform_0(%arg0: i32, %arg1: i32) -> (i32, i32) {
    %c0_i32 = arith.constant 0 : i32
    return %arg0, %arg1 : i32, i32
  }
  func.func @transform_1(%arg0: i32, %arg1: i32) -> (i32, i32) {
    %c0_i32 = arith.constant 0 : i32
    %c0_i32_0 = arith.constant 0 : i32
    return %arg0, %c0_i32 : i32, i32
  }
  func.func @transform_2(%arg0: i32, %arg1: i32) -> (i32, i32) {
    %c0_i32 = arith.constant 0 : i32
    %c0_i32_0 = arith.constant 0 : i32
    return %arg1, %c0_i32 : i32, i32
  }
  func.func @transform_3(%arg0: i32, %arg1: i32) -> (i32, i32) {
    %c0_i32 = arith.constant 0 : i32
    %c0_i32_0 = arith.constant 0 : i32
    return %arg0, %c0_i32 : i32, i32
  }
  func.func @transform_4(%arg0: i32, %arg1: i32) -> (i32, i32) {
    %c0_i32 = arith.constant 0 : i32
    %c0_i32_0 = arith.constant 0 : i32
    return %arg0, %c0_i32 : i32, i32
  }
  func.func @transform_5(%arg0: i32, %arg1: i32) -> (i32, i32) {
    %c0_i32 = arith.constant 0 : i32
    %c0_i32_0 = arith.constant 0 : i32
    return %arg0, %c0_i32 : i32, i32
  }
  func.func @transform_6(%arg0: i32, %arg1: i32) -> (i32, i32) {
    %c0_i32 = arith.constant 0 : i32
    %c0_i32_0 = arith.constant 0 : i32
    return %arg0, %c0_i32 : i32, i32
  }
}

module attributes {stable_mosaic.version = 11 : i64} {
  func.func @_spmm_sum_kernel(%arg0: i32, %arg1: i32, %arg2: memref<256x256xi8, #tpu.memory_space<vmem>>, %arg3: memref<256x1xf32, #tpu.memory_space<vmem>>, %arg4: memref<256x128xbf16, #tpu.memory_space<vmem>>, %arg5: memref<256x128xf32, #tpu.memory_space<vmem>>, %arg6: memref<256x128xf32, #tpu.memory_space<vmem>>, %arg7: memref<256x128xbf16, #tpu.memory_space<vmem>>, %arg8: memref<256x128xf32, #tpu.memory_space<vmem>>) attributes {dimension_semantics = [#tpu.dimension_semantics<parallel>, #tpu.dimension_semantics<arbitrary>], iteration_bounds = array<i64: 1, 1>, scalar_prefetch = 0 : i64, scratch_operands = 0 : i64, tpu.core_type = #tpu.core_type<tc>, window_params = [{pipeline_mode = #tpu.pipeline_mode<double_buffered>, transform_indices = @transform_0, window_bounds = array<i64: 256, 256>}, {transform_indices = @transform_1, window_bounds = array<i64: 256, 1>}, {transform_indices = @transform_2, window_bounds = array<i64: 256, 128>}, {transform_indices = @transform_3, window_bounds = array<i64: 256, 128>}, {transform_indices = @transform_4, window_bounds = array<i64: 256, 128>}, {transform_indices = @transform_5, window_bounds = array<i64: 256, 128>}, {transform_indices = @transform_6, window_bounds = array<i64: 256, 128>}]} {
    %c0_i32 = arith.constant 0 : i32
    %0 = arith.cmpi eq, %arg1, %c0_i32 : i32
    %1 = arith.extui %0 : i1 to i32
    %c0_i32_0 = arith.constant 0 : i32
    %2 = arith.cmpi ne, %1, %c0_i32_0 : i32
    scf.if %2 {
      %cst_10 = arith.constant 0.000000e+00 : f32
      %13 = vector.broadcast %cst_10 : f32 to vector<256x128xf32>
      %c0_11 = arith.constant 0 : index
      %c0_12 = arith.constant 0 : index
      %14 = vector.load %arg6[%c0_11, %c0_12] : memref<256x128xf32, #tpu.memory_space<vmem>>, vector<256x128xf32>
      tpu.vector_store %arg6[%c0_11, %c0_12], %13 {strides = array<i32>} : memref<256x128xf32, #tpu.memory_space<vmem>>, vector<256x128xf32>,
    } else {
    }
    %c0 = arith.constant 0 : index
    %c0_1 = arith.constant 0 : index
    %3 = vector.load %arg2[%c0, %c0_1] : memref<256x256xi8, #tpu.memory_space<vmem>>, vector<256x256xi8>
    %4 = arith.sitofp %3 : vector<256x256xi8> to vector<256x256xbf16>
    %c0_2 = arith.constant 0 : index
    %c0_3 = arith.constant 0 : index
    %5 = vector.load %arg6[%c0_2, %c0_3] : memref<256x128xf32, #tpu.memory_space<vmem>>, vector<256x128xf32>
    %c0_4 = arith.constant 0 : index
    %c0_5 = arith.constant 0 : index
    %6 = vector.load %arg4[%c0_4, %c0_5] : memref<256x128xbf16, #tpu.memory_space<vmem>>, vector<256x128xbf16>
    %cst = arith.constant dense<0.000000e+00> : vector<256x128xf32>
    %7 = tpu.matmul %4, %6, %cst {dimension_numbers = #tpu.dot_dimension_numbers<[1], [0], [0], [1], [0, 0, 1, 1], [], []>} : vector<256x256xbf16>, vector<256x128xbf16>, vector<256x128xf32> -> vector<256x128xf32>
    %8 = arith.addf %5, %7 : vector<256x128xf32>
    %c0_6 = arith.constant 0 : index
    %c0_7 = arith.constant 0 : index
    %9 = vector.load %arg6[%c0_6, %c0_7] : memref<256x128xf32, #tpu.memory_space<vmem>>, vector<256x128xf32>
    tpu.vector_store %arg6[%c0_6, %c0_7], %8 {strides = array<i32>} : memref<256x128xf32, #tpu.memory_space<vmem>>, vector<256x128xf32>,
    %c0_i32_8 = arith.constant 0 : i32
    %10 = arith.cmpi eq, %arg1, %c0_i32_8 : i32
    %11 = arith.extui %10 : i1 to i32
    %c0_i32_9 = arith.constant 0 : i32
    %12 = arith.cmpi ne, %11, %c0_i32_9 : i32
    scf.if %12 {
      %c0_10 = arith.constant 0 : index
      %c0_11 = arith.constant 0 : index
      %13 = vector.load %arg6[%c0_10, %c0_11] : memref<256x128xf32, #tpu.memory_space<vmem>>, vector<256x128xf32>
      %c0_12 = arith.constant 0 : index
      %c0_13 = arith.constant 0 : index
      %14 = vector.load %arg3[%c0_12, %c0_13] : memref<256x1xf32, #tpu.memory_space<vmem>>, vector<256x1xf32>
      %15 = vector.broadcast %14 : vector<256x1xf32> to vector<256x128xf32>
      %16 = arith.mulf %13, %15 : vector<256x128xf32>
      %c0_14 = arith.constant 0 : index
      %c0_15 = arith.constant 0 : index
      %17 = vector.load %arg6[%c0_14, %c0_15] : memref<256x128xf32, #tpu.memory_space<vmem>>, vector<256x128xf32>
      tpu.vector_store %arg6[%c0_14, %c0_15], %16 {strides = array<i32>} : memref<256x128xf32, #tpu.memory_space<vmem>>, vector<256x128xf32>,
      %18 = arith.truncf %16 : vector<256x128xf32> to vector<256x128xbf16>
      %c0_16 = arith.constant 0 : index
      %c0_17 = arith.constant 0 : index
      %19 = vector.load %arg7[%c0_16, %c0_17] : memref<256x128xbf16, #tpu.memory_space<vmem>>, vector<256x128xbf16>
      tpu.vector_store %arg7[%c0_16, %c0_17], %18 {strides = array<i32>} : memref<256x128xbf16, #tpu.memory_space<vmem>>, vector<256x128xbf16>,
      %c0_18 = arith.constant 0 : index
      %c0_19 = arith.constant 0 : index
      %20 = vector.load %arg5[%c0_18, %c0_19] : memref<256x128xf32, #tpu.memory_space<vmem>>, vector<256x128xf32>
      %21 = arith.addf %20, %16 : vector<256x128xf32>
      %c0_20 = arith.constant 0 : index
      %c0_21 = arith.constant 0 : index
      %22 = vector.load %arg8[%c0_20, %c0_21] : memref<256x128xf32, #tpu.memory_space<vmem>>, vector<256x128xf32>
      tpu.vector_store %arg8[%c0_20, %c0_21], %21 {strides = array<i32>} : memref<256x128xf32, #tpu.memory_space<vmem>>, vector<256x128xf32>,
    } else {
    }
    return
  }
  func.func @transform_0(%arg0: i32, %arg1: i32) -> (i32, i32) {
    %c0_i32 = arith.constant 0 : i32
    return %arg0, %arg1 : i32, i32
  }
  func.func @transform_1(%arg0: i32, %arg1: i32) -> (i32, i32) {
    %c0_i32 = arith.constant 0 : i32
    %c0_i32_0 = arith.constant 0 : i32
    return %arg0, %c0_i32 : i32, i32
  }
  func.func @transform_2(%arg0: i32, %arg1: i32) -> (i32, i32) {
    %c0_i32 = arith.constant 0 : i32
    %c0_i32_0 = arith.constant 0 : i32
    return %arg1, %c0_i32 : i32, i32
  }
  func.func @transform_3(%arg0: i32, %arg1: i32) -> (i32, i32) {
    %c0_i32 = arith.constant 0 : i32
    %c0_i32_0 = arith.constant 0 : i32
    return %arg0, %c0_i32 : i32, i32
  }
  func.func @transform_4(%arg0: i32, %arg1: i32) -> (i32, i32) {
    %c0_i32 = arith.constant 0 : i32
    %c0_i32_0 = arith.constant 0 : i32
    return %arg0, %c0_i32 : i32, i32
  }
  func.func @transform_5(%arg0: i32, %arg1: i32) -> (i32, i32) {
    %c0_i32 = arith.constant 0 : i32
    %c0_i32_0 = arith.constant 0 : i32
    return %arg0, %c0_i32 : i32, i32
  }
  func.func @transform_6(%arg0: i32, %arg1: i32) -> (i32, i32) {
    %c0_i32 = arith.constant 0 : i32
    %c0_i32_0 = arith.constant 0 : i32
    return %arg0, %c0_i32 : i32, i32
  }
}

</mosaic_0001>

<llo_original>
// kernel: lightgcn_forward.3
$region0: #{lightgcn_forward.3}
  #allocation0 [shape = 'u32[]', space=smem, size = 0x4, offset = 0x4, fixed_abs, tag = 'smem constant byte address 0x4 - core index']
  #allocation1 [shape = 'u32[144,128]{1,0:T(1,128)}', space=vmem, size = 0x12000, scoped, tag = 'internal scratch']
  %s0 = inlined_call_operand.vmem [shape: s8[256,256], index: 0, kind: input, shape index: {}]
  %s1 = inlined_call_operand.vmem [shape: f32[256,1], index: 1, kind: input, shape index: {}]
  %s2 = inlined_call_operand.vmem [shape: bf16[256,128], index: 2, kind: input, shape index: {}]
  %s3 = inlined_call_operand.vmem [shape: f32[256,128], index: 3, kind: input, shape index: {}, may-alias: {3,6}]
  %s4 = inlined_call_operand.hbm [shape: f32[256,128], index: 4, kind: output, shape index: {0}]
  %s5 = inlined_call_operand.vmem [shape: bf16[256,128], index: 5, kind: output, shape index: {1}]
  %s6 = inlined_call_operand.vmem [shape: f32[256,128], index: 6, kind: output, shape index: {2}, may-alias: {3,6}]
  %7 = xla_tuple %s4, %s5, %s6
  %s8 = sld [smem:[#allocation0]]
  $region50: #{lightgcn_forward.3} parent=0
    _
  %s10 = ssub.s32 1, %s8
  %s11 = scalar_select 0, %s10, %s8
  $region1: #{lightgcn_forward.3} parent=0
    #allocation2 [shape = 'u8[131072]{0}', space=vmem, size = 0x20000, scoped, tag = 'output window, operand 0, single buffered']
    #allocation3 [shape = 's32[1]{0}', space=sflag, size = 0x4, scoped, tag = 'scoped memory for lightgcn_forward.3']
    %12 = vsyncpa [#allocation3], 0
    // Predicated region
    $region2: #{lightgcn_forward.3} parent=1 // pred_check
      _
    $region3: #{lightgcn_forward.3} parent=1 // pred_check_branch
      %14 = sbr.rel (0) target = $region5
    $region4: #{lightgcn_forward.3} parent=1 // pred_region
      _
    $region5: #{lightgcn_forward.3} parent=1 // pred_fallthru
      _
    // Predicated region
    $region6: #{lightgcn_forward.3} parent=1 // pred_check
      _
    $region7: #{lightgcn_forward.3} parent=1 // pred_check_branch
      %16 = sbr.rel (0) target = $region9
    $region8: #{lightgcn_forward.3} parent=1 // pred_region
      _
    $region9: #{lightgcn_forward.3} parent=1 // pred_fallthru
      _
    // Predicated region
    $region10: #{lightgcn_forward.3} parent=1 // pred_check
      _
    $region11: #{lightgcn_forward.3} parent=1 // pred_check_branch
      %18 = sbr.rel (0) target = $region13
    $region12: #{lightgcn_forward.3} parent=1 // pred_region
      _
    $region13: #{lightgcn_forward.3} parent=1 // pred_fallthru
      _
    // Predicated region
    $region14: #{lightgcn_forward.3} parent=1 // pred_check
      _
    $region15: #{lightgcn_forward.3} parent=1 // pred_check_branch
      %20 = sbr.rel (0) target = $region17
    $region16: #{lightgcn_forward.3} parent=1 // pred_region
      _
    $region17: #{lightgcn_forward.3} parent=1 // pred_fallthru
      _
    %p22 = scmp.eq.s32.totalorder 0, 0
    // Predicated region
    $region18: #{lightgcn_forward.3} parent=1 // pred_check
      %p23 = pneg %p22
    $region19: #{lightgcn_forward.3} parent=1 // pred_check_branch
      %25 = sbr.rel (%p23) target = $region21
    $region20: #{lightgcn_forward.3} parent=1 // pred_region
      %26 = vst [vmem:[#allocation2] sm:$0xff] 0.0
      %27 = vst [vmem:[#allocation2 + $0x8] sm:$0xff] 0.0
      %28 = vst [vmem:[#allocation2 + $0x10] sm:$0xff] 0.0
      %29 = vst [vmem:[#allocation2 + $0x18] sm:$0xff] 0.0
      %30 = vst [vmem:[#allocation2 + $0x20] sm:$0xff] 0.0
      %31 = vst [vmem:[#allocation2 + $0x28] sm:$0xff] 0.0
      %32 = vst [vmem:[#allocation2 + $0x30] sm:$0xff] 0.0
      %33 = vst [vmem:[#allocation2 + $0x38] sm:$0xff] 0.0
      %34 = vst [vmem:[#allocation2 + $0x40] sm:$0xff] 0.0
      %35 = vst [vmem:[#allocation2 + $0x48] sm:$0xff] 0.0
      %36 = vst [vmem:[#allocation2 + $0x50] sm:$0xff] 0.0
      %37 = vst [vmem:[#allocation2 + $0x58] sm:$0xff] 0.0
      %38 = vst [vmem:[#allocation2 + $0x60] sm:$0xff] 0.0
      %39 = vst [vmem:[#allocation2 + $0x68] sm:$0xff] 0.0
      %40 = vst [vmem:[#allocation2 + $0x70] sm:$0xff] 0.0
      %41 = vst [vmem:[#allocation2 + $0x78] sm:$0xff] 0.0
      %42 = vst [vmem:[#allocation2 + $0x80] sm:$0xff] 0.0
      %43 = vst [vmem:[#allocation2 + $0x88] sm:$0xff] 0.0
      %44 = vst [vmem:[#allocation2 + $0x90] sm:$0xff] 0.0
      %45 = vst [vmem:[#allocation2 + $0x98] sm:$0xff] 0.0
      %46 = vst [vmem:[#allocation2 + $0xa0] sm:$0xff] 0.0
      %47 = vst [vmem:[#allocation2 + $0xa8] sm:$0xff] 0.0
      %48 = vst [vmem:[#allocation2 + $0xb0] sm:$0xff] 0.0
      %49 = vst [vmem:[#allocation2 + $0xb8] sm:$0xff] 0.0
      %50 = vst [vmem:[#allocation2 + $0xc0] sm:$0xff] 0.0
      %51 = vst [vmem:[#allocation2 + $0xc8] sm:$0xff] 0.0
      %52 = vst [vmem:[#allocation2 + $0xd0] sm:$0xff] 0.0
      %53 = vst [vmem:[#allocation2 + $0xd8] sm:$0xff] 0.0
      %54 = vst [vmem:[#allocation2 + $0xe0] sm:$0xff] 0.0
      %55 = vst [vmem:[#allocation2 + $0xe8] sm:$0xff] 0.0
      %56 = vst [vmem:[#allocation2 + $0xf0] sm:$0xff] 0.0
      %57 = vst [vmem:[#allocation2 + $0xf8] sm:$0xff] 0.0
    $region21: #{lightgcn_forward.3} parent=1 // pred_fallthru
      _
    %v58 = vld [vmem:[%s0] sm:$0xff]
    %v59 = vld [vmem:[%s0 + $0x8] sm:$0xff]
    %v60 = vld [vmem:[%s0 + $0x10] sm:$0xff]
    %v61 = vld [vmem:[%s0 + $0x18] sm:$0xff]
    %v62 = vld [vmem:[%s0 + $0x20] sm:$0xff]
    %v63 = vld [vmem:[%s0 + $0x28] sm:$0xff]
    %v64 = vld [vmem:[%s0 + $0x30] sm:$0xff]
    %v65 = vld [vmem:[%s0 + $0x38] sm:$0xff]
    %v66 = vld [vmem:[%s0 + $0x40] sm:$0xff]
    %v67 = vld [vmem:[%s0 + $0x48] sm:$0xff]
    %v68 = vld [vmem:[%s0 + $0x50] sm:$0xff]
    %v69 = vld [vmem:[%s0 + $0x58] sm:$0xff]
    %v70 = vld [vmem:[%s0 + $0x60] sm:$0xff]
    %v71 = vld [vmem:[%s0 + $0x68] sm:$0xff]
    %v72 = vld [vmem:[%s0 + $0x70] sm:$0xff]
    %v73 = vld [vmem:[%s0 + $0x78] sm:$0xff]
    %v74 = vunpack.c.l.s8.bf16 %v58
    %v75 = vunpack.c.l.s8.bf16 %v59
    %v76 = vunpack.c.h.s8.bf16 %v58
    %v77 = vunpack.c.h.s8.bf16 %v59
    %v78 = vunpack.c.l.s8.bf16 %v60
    %v79 = vunpack.c.l.s8.bf16 %v61
    %v80 = vunpack.c.h.s8.bf16 %v60
    %v81 = vunpack.c.h.s8.bf16 %v61
    %v82 = vunpack.c.l.s8.bf16 %v62
    %v83 = vunpack.c.l.s8.bf16 %v63
    %v84 = vunpack.c.h.s8.bf16 %v62
    %v85 = vunpack.c.h.s8.bf16 %v63
    %v86 = vunpack.c.l.s8.bf16 %v64
    %v87 = vunpack.c.l.s8.bf16 %v65
    %v88 = vunpack.c.h.s8.bf16 %v64
    %v89 = vunpack.c.h.s8.bf16 %v65
    %v90 = vunpack.c.l.s8.bf16 %v66
    %v91 = vunpack.c.l.s8.bf16 %v67
    %v92 = vunpack.c.h.s8.bf16 %v66
    %v93 = vunpack.c.h.s8.bf16 %v67
    %v94 = vunpack.c.l.s8.bf16 %v68
    %v95 = vunpack.c.l.s8.bf16 %v69
    %v96 = vunpack.c.h.s8.bf16 %v68
    %v97 = vunpack.c.h.s8.bf16 %v69
    %v98 = vunpack.c.l.s8.bf16 %v70
    %v99 = vunpack.c.l.s8.bf16 %v71
    %v100 = vunpack.c.h.s8.bf16 %v70
    %v101 = vunpack.c.h.s8.bf16 %v71
    %v102 = vunpack.c.l.s8.bf16 %v72
    %v103 = vunpack.c.l.s8.bf16 %v73
    %v104 = vunpack.c.h.s8.bf16 %v72
    %v105 = vunpack.c.h.s8.bf16 %v73
    %v106 = vld [vmem:[#allocation2] sm:$0xff]
    %v107 = vld [vmem:[#allocation2 + $0x8] sm:$0xff]
    %v108 = vld [vmem:[#allocation2 + $0x10] sm:$0xff]
    %v109 = vld [vmem:[#allocation2 + $0x18] sm:$0xff]
    %v110 = vld [vmem:[#allocation2 + $0x20] sm:$0xff]
    %v111 = vld [vmem:[#allocation2 + $0x28] sm:$0xff]
    %v112 = vld [vmem:[#allocation2 + $0x30] sm:$0xff]
    %v113 = vld [vmem:[#allocation2 + $0x38] sm:$0xff]
    %v114 = vld [vmem:[#allocation2 + $0x40] sm:$0xff]
    %v115 = vld [vmem:[#allocation2 + $0x48] sm:$0xff]
    %v116 = vld [vmem:[#allocation2 + $0x50] sm:$0xff]
    %v117 = vld [vmem:[#allocation2 + $0x58] sm:$0xff]
    %v118 = vld [vmem:[#allocation2 + $0x60] sm:$0xff]
    %v119 = vld [vmem:[#allocation2 + $0x68] sm:$0xff]
    %v120 = vld [vmem:[#allocation2 + $0x70] sm:$0xff]
    %v121 = vld [vmem:[#allocation2 + $0x78] sm:$0xff]
    %v122 = vld [vmem:[#allocation2 + $0x80] sm:$0xff]
    %v123 = vld [vmem:[#allocation2 + $0x88] sm:$0xff]
    %v124 = vld [vmem:[#allocation2 + $0x90] sm:$0xff]
    %v125 = vld [vmem:[#allocation2 + $0x98] sm:$0xff]
    %v126 = vld [vmem:[#allocation2 + $0xa0] sm:$0xff]
    %v127 = vld [vmem:[#allocation2 + $0xa8] sm:$0xff]
    %v128 = vld [vmem:[#allocation2 + $0xb0] sm:$0xff]
    %v129 = vld [vmem:[#allocation2 + $0xb8] sm:$0xff]
    %v130 = vld [vmem:[#allocation2 + $0xc0] sm:$0xff]
    %v131 = vld [vmem:[#allocation2 + $0xc8] sm:$0xff]
    %v132 = vld [vmem:[#allocation2 + $0xd0] sm:$0xff]
    %v133 = vld [vmem:[#allocation2 + $0xd8] sm:$0xff]
    %v134 = vld [vmem:[#allocation2 + $0xe0] sm:$0xff]
    %v135 = vld [vmem:[#allocation2 + $0xe8] sm:$0xff]
    %v136 = vld [vmem:[#allocation2 + $0xf0] sm:$0xff]
    %v137 = vld [vmem:[#allocation2 + $0xf8] sm:$0xff]
    %v138 = vld [vmem:[%s2] sm:$0xf]
    %v139 = vld [vmem:[%s2 + $0x4] sm:$0xf]
    %v140 = vld [vmem:[%s2 + $0x8] sm:$0xf]
    %v141 = vld [vmem:[%s2 + $0xc] sm:$0xf]
    %v142 = vld [vmem:[%s2 + $0x10] sm:$0xf]
    %v143 = vld [vmem:[%s2 + $0x14] sm:$0xf]
    %v144 = vld [vmem:[%s2 + $0x18] sm:$0xf]
    %v145 = vld [vmem:[%s2 + $0x1c] sm:$0xf]
    %v146 = vld [vmem:[%s2 + $0x20] sm:$0xf]
    %v147 = vld [vmem:[%s2 + $0x24] sm:$0xf]
    %v148 = vld [vmem:[%s2 + $0x28] sm:$0xf]
    %v149 = vld [vmem:[%s2 + $0x2c] sm:$0xf]
    %v150 = vld [vmem:[%s2 + $0x30] sm:$0xf]
    %v151 = vld [vmem:[%s2 + $0x34] sm:$0xf]
    %v152 = vld [vmem:[%s2 + $0x38] sm:$0xf]
    %v153 = vld [vmem:[%s2 + $0x3c] sm:$0xf]
    %v154 = vld [vmem:[%s2 + $0x40] sm:$0xf]
    %v155 = vld [vmem:[%s2 + $0x44] sm:$0xf]
    %v156 = vld [vmem:[%s2 + $0x48] sm:$0xf]
    %v157 = vld [vmem:[%s2 + $0x4c] sm:$0xf]
    %v158 = vld [vmem:[%s2 + $0x50] sm:$0xf]
    %v159 = vld [vmem:[%s2 + $0x54] sm:$0xf]
    %v160 = vld [vmem:[%s2 + $0x58] sm:$0xf]
    %v161 = vld [vmem:[%s2 + $0x5c] sm:$0xf]
    %v162 = vld [vmem:[%s2 + $0x60] sm:$0xf]
    %v163 = vld [vmem:[%s2 + $0x64] sm:$0xf]
    %v164 = vld [vmem:[%s2 + $0x68] sm:$0xf]
    %v165 = vld [vmem:[%s2 + $0x6c] sm:$0xf]
    %v166 = vld [vmem:[%s2 + $0x70] sm:$0xf]
    %v167 = vld [vmem:[%s2 + $0x74] sm:$0xf]
    %v168 = vld [vmem:[%s2 + $0x78] sm:$0xf]
    %v169 = vld [vmem:[%s2 + $0x7c] sm:$0xf]
    %v202 = vunpack.c.l.b16 %v138
    %v203 = vunpack.c.l.b16 %v139
    %v204 = vunpack.c.l.b16 %v140
    %v205 = vunpack.c.l.b16 %v141
    %v206 = vunpack.c.l.b16 %v142
    %v207 = vunpack.c.l.b16 %v143
    %v208 = vunpack.c.l.b16 %v144
    %v209 = vunpack.c.l.b16 %v145
    %v210 = vunpack.c.l.b16 %v146
    %v211 = vunpack.c.l.b16 %v147
    %v212 = vunpack.c.l.b16 %v148
    %v213 = vunpack.c.l.b16 %v149
    %v214 = vunpack.c.l.b16 %v150
    %v215 = vunpack.c.l.b16 %v151
    %v216 = vunpack.c.l.b16 %v152
    %v217 = vunpack.c.l.b16 %v153
    %v218 = vunpack.c.l.b16 %v154
    %v219 = vunpack.c.l.b16 %v155
    %v220 = vunpack.c.l.b16 %v156
    %v221 = vunpack.c.l.b16 %v157
    %v222 = vunpack.c.l.b16 %v158
    %v223 = vunpack.c.l.b16 %v159
    %v224 = vunpack.c.l.b16 %v160
    %v225 = vunpack.c.l.b16 %v161
    %v226 = vunpack.c.l.b16 %v162
    %v227 = vunpack.c.l.b16 %v163
    %v228 = vunpack.c.l.b16 %v164
    %v229 = vunpack.c.l.b16 %v165
    %v230 = vunpack.c.l.b16 %v166
    %v231 = vunpack.c.l.b16 %v167
    %v232 = vunpack.c.l.b16 %v168
    %v233 = vunpack.c.l.b16 %v169
    %v234 = vpack.c.b16 %v203, %v202
    %v235 = vpack.c.b16 %v205, %v204
    %v236 = vpack.c.b16 %v207, %v206
    %v237 = vpack.c.b16 %v209, %v208
    %v238 = vpack.c.b16 %v211, %v210
    %v239 = vpack.c.b16 %v213, %v212
    %v240 = vpack.c.b16 %v215, %v214
    %v241 = vpack.c.b16 %v217, %v216
    %v242 = vpack.c.b16 %v219, %v218
    %v243 = vpack.c.b16 %v221, %v220
    %v244 = vpack.c.b16 %v223, %v222
    %v245 = vpack.c.b16 %v225, %v224
    %v246 = vpack.c.b16 %v227, %v226
    %v247 = vpack.c.b16 %v229, %v228
    %v248 = vpack.c.b16 %v231, %v230
    %v249 = vpack.c.b16 %v233, %v232
    %266 = vmatprep.subr.bf16.mxu0 0
    %267 = vmatpush1.bf16.msra.mxu0 %v234
    %268 = vmatprep.subr.bf16.mxu0 0
    %269 = vmatpush1.bf16.msra.mxu0 %v235
    %270 = vmatprep.subr.bf16.mxu0 0
    %271 = vmatpush1.bf16.msra.mxu0 %v236
    %272 = vmatprep.subr.bf16.mxu0 0
    %273 = vmatpush1.bf16.msra.mxu0 %v237
    %274 = vmatprep.subr.bf16.mxu0 0
    %275 = vmatpush1.bf16.msra.mxu0 %v238
    %276 = vmatprep.subr.bf16.mxu0 0
    %277 = vmatpush1.bf16.msra.mxu0 %v239
    %278 = vmatprep.subr.bf16.mxu0 0
    %279 = vmatpush1.bf16.msra.mxu0 %v240
    %280 = vmatprep.subr.bf16.mxu0 0
    %281 = vmatpush1.bf16.msra.mxu0 %v241
    %282 = vmatprep.subr.bf16.mxu0 0
    %283 = vmatpush1.bf16.msra.mxu0 %v242
    %284 = vmatprep.subr.bf16.mxu0 0
    %285 = vmatpush1.bf16.msra.mxu0 %v243
    %286 = vmatprep.subr.bf16.mxu0 0
    %287 = vmatpush1.bf16.msra.mxu0 %v244
    %288 = vmatprep.subr.bf16.mxu0 0
    %289 = vmatpush1.bf16.msra.mxu0 %v245
    %290 = vmatprep.subr.bf16.mxu0 0
    %291 = vmatpush1.bf16.msra.mxu0 %v246
    %292 = vmatprep.subr.bf16.mxu0 0
    %293 = vmatpush1.bf16.msra.mxu0 %v247
    %294 = vmatprep.subr.bf16.mxu0 0
    %295 = vmatpush1.bf16.msra.mxu0 %v248
    %296 = vmatprep.subr.bf16.mxu0 0
    %297 = vmatpush1.bf16.msra.mxu0 %v249
    %298 = vmatprep.mubr.bf16.mxu0 %v75
    %299 = vmatmul.mubr.bf16.gmra.mrb[0].mxu0 %v74
    %v300 = vpop.f32.mrb[0].mxu0
    %v301 = vadd.f32 0.0, %v300
    %v302 = vpop.f32.mrb[0].mxu0
    %v303 = vpop.f32.mrb[0].mxu0
    %v304 = vadd.f32 0.0, %v303
    %v305 = vpop.f32.mrb[0].mxu0
    %306 = vmatprep.mubr.bf16.mxu0 %v77
    %307 = vmatmul.mubr.bf16.gmra.mrb[0].mxu0 %v76
    %v308 = vpop.f32.mrb[0].mxu0
    %v309 = vadd.f32 0.0, %v308
    %v310 = vpop.f32.mrb[0].mxu0
    %v311 = vpop.f32.mrb[0].mxu0
    %v312 = vadd.f32 0.0, %v311
    %v313 = vpop.f32.mrb[0].mxu0
    %314 = vmatprep.mubr.bf16.mxu0 %v79
    %315 = vmatmul.mubr.bf16.gmra.mrb[0].mxu0 %v78
    %v316 = vpop.f32.mrb[0].mxu0
    %v317 = vadd.f32 0.0, %v316
    %v318 = vpop.f32.mrb[0].mxu0
    %v319 = vpop.f32.mrb[0].mxu0
    %v320 = vadd.f32 0.0, %v319
    %v321 = vpop.f32.mrb[0].mxu0
    %322 = vmatprep.mubr.bf16.mxu0 %v81
    %323 = vmatmul.mubr.bf16.gmra.mrb[0].mxu0 %v80
    %v324 = vpop.f32.mrb[0].mxu0
    %v325 = vadd.f32 0.0, %v324
    %v326 = vpop.f32.mrb[0].mxu0
    %v327 = vpop.f32.mrb[0].mxu0
    %v328 = vadd.f32 0.0, %v327
    %v329 = vpop.f32.mrb[0].mxu0
    %330 = vmatprep.mubr.bf16.mxu0 %v83
    %331 = vmatmul.mubr.bf16.gmra.mrb[0].mxu0 %v82
    %v332 = vpop.f32.mrb[0].mxu0
    %v333 = vadd.f32 0.0, %v332
    %v334 = vpop.f32.mrb[0].mxu0
    %v335 = vpop.f32.mrb[0].mxu0
    %v336 = vadd.f32 0.0, %v335
    %v337 = vpop.f32.mrb[0].mxu0
    %338 = vmatprep.mubr.bf16.mxu0 %v85
    %339 = vmatmul.mubr.bf16.gmra.mrb[0].mxu0 %v84
    %v340 = vpop.f32.mrb[0].mxu0
    %v341 = vadd.f32 0.0, %v340
    %v342 = vpop.f32.mrb[0].mxu0
    %v343 = vpop.f32.mrb[0].mxu0
    %v344 = vadd.f32 0.0, %v343
    %v345 = vpop.f32.mrb[0].mxu0
    %346 = vmatprep.mubr.bf16.mxu0 %v87
    %347 = vmatmul.mubr.bf16.gmra.mrb[0].mxu0 %v86
    %v348 = vpop.f32.mrb[0].mxu0
    %v349 = vadd.f32 0.0, %v348
    %v350 = vpop.f32.mrb[0].mxu0
    %v351 = vpop.f32.mrb[0].mxu0
    %v352 = vadd.f32 0.0, %v351
    %v353 = vpop.f32.mrb[0].mxu0
    %354 = vmatprep.mubr.bf16.mxu0 %v89
    %355 = vmatmul.mubr.bf16.gmra.mrb[0].mxu0 %v88
    %v356 = vpop.f32.mrb[0].mxu0
    %v357 = vadd.f32 0.0, %v356
    %v358 = vpop.f32.mrb[0].mxu0
    %v359 = vpop.f32.mrb[0].mxu0
    %v360 = vadd.f32 0.0, %v359
    %v361 = vpop.f32.mrb[0].mxu0
    %362 = vmatprep.mubr.bf16.mxu0 %v91
    %363 = vmatmul.mubr.bf16.gmra.mrb[0].mxu0 %v90
    %v364 = vpop.f32.mrb[0].mxu0
    %v365 = vadd.f32 0.0, %v364
    %v366 = vpop.f32.mrb[0].mxu0
    %v367 = vpop.f32.mrb[0].mxu0
    %v368 = vadd.f32 0.0, %v367
    %v369 = vpop.f32.mrb[0].mxu0
    %370 = vmatprep.mubr.bf16.mxu0 %v93
    %371 = vmatmul.mubr.bf16.gmra.mrb[0].mxu0 %v92
    %v372 = vpop.f32.mrb[0].mxu0
    %v373 = vadd.f32 0.0, %v372
    %v374 = vpop.f32.mrb[0].mxu0
    %v375 = vpop.f32.mrb[0].mxu0
    %v376 = vadd.f32 0.0, %v375
    %v377 = vpop.f32.mrb[0].mxu0
    %378 = vmatprep.mubr.bf16.mxu0 %v95
    %379 = vmatmul.mubr.bf16.gmra.mrb[0].mxu0 %v94
    %v380 = vpop.f32.mrb[0].mxu0
    %v381 = vadd.f32 0.0, %v380
    %v382 = vpop.f32.mrb[0].mxu0
    %v383 = vpop.f32.mrb[0].mxu0
    %v384 = vadd.f32 0.0, %v383
    %v385 = vpop.f32.mrb[0].mxu0
    %386 = vmatprep.mubr.bf16.mxu0 %v97
    %387 = vmatmul.mubr.bf16.gmra.mrb[0].mxu0 %v96
    %v388 = vpop.f32.mrb[0].mxu0
    %v389 = vadd.f32 0.0, %v388
    %v390 = vpop.f32.mrb[0].mxu0
    %v391 = vpop.f32.mrb[0].mxu0
    %v392 = vadd.f32 0.0, %v391
    %v393 = vpop.f32.mrb[0].mxu0
    %394 = vmatprep.mubr.bf16.mxu0 %v99
    %395 = vmatmul.mubr.bf16.gmra.mrb[0].mxu0 %v98
    %v396 = vpop.f32.mrb[0].mxu0
    %v397 = vadd.f32 0.0, %v396
    %v398 = vpop.f32.mrb[0].mxu0
    %v399 = vpop.f32.mrb[0].mxu0
    %v400 = vadd.f32 0.0, %v399
    %v401 = vpop.f32.mrb[0].mxu0
    %402 = vmatprep.mubr.bf16.mxu0 %v101
    %403 = vmatmul.mubr.bf16.gmra.mrb[0].mxu0 %v100
    %v404 = vpop.f32.mrb[0].mxu0
    %v405 = vadd.f32 0.0, %v404
    %v406 = vpop.f32.mrb[0].mxu0
    %v407 = vpop.f32.mrb[0].mxu0
    %v408 = vadd.f32 0.0, %v407
    %v409 = vpop.f32.mrb[0].mxu0
    %410 = vmatprep.mubr.bf16.mxu0 %v103
    %411 = vmatmul.mubr.bf16.gmra.mrb[0].mxu0 %v102
    %v412 = vpop.f32.mrb[0].mxu0
    %v413 = vadd.f32 0.0, %v412
    %v414 = vpop.f32.mrb[0].mxu0
    %v415 = vpop.f32.mrb[0].mxu0
    %v416 = vadd.f32 0.0, %v415
    %v417 = vpop.f32.mrb[0].mxu0
    %418 = vmatprep.mubr.bf16.mxu0 %v105
    %419 = vmatmul.mubr.bf16.gmra.mrb[0].mxu0 %v104
    %v420 = vpop.f32.mrb[0].mxu0
    %v421 = vadd.f32 0.0, %v420
    %v422 = vpop.f32.mrb[0].mxu0
    %v423 = vpop.f32.mrb[0].mxu0
    %v424 = vadd.f32 0.0, %v423
    %v425 = vpop.f32.mrb[0].mxu0
    %426 = vdwg.mxu0
    %v427 = vadd.f32 %v106, %v301
    %v428 = vadd.f32 %v107, %v304
    %v429 = vadd.f32 %v108, %v309
    %v430 = vadd.f32 %v109, %v312
    %v431 = vadd.f32 %v110, %v317
    %v432 = vadd.f32 %v111, %v320
    %v433 = vadd.f32 %v112, %v325
    %v434 = vadd.f32 %v113, %v328
    %v435 = vadd.f32 %v114, %v333
    %v436 = vadd.f32 %v115, %v336
    %v437 = vadd.f32 %v116, %v341
    %v438 = vadd.f32 %v117, %v344
    %v439 = vadd.f32 %v118, %v349
    %v440 = vadd.f32 %v119, %v352
    %v441 = vadd.f32 %v120, %v357
    %v442 = vadd.f32 %v121, %v360
    %v443 = vadd.f32 %v122, %v365
    %v444 = vadd.f32 %v123, %v368
    %v445 = vadd.f32 %v124, %v373
    %v446 = vadd.f32 %v125, %v376
    %v447 = vadd.f32 %v126, %v381
    %v448 = vadd.f32 %v127, %v384
    %v449 = vadd.f32 %v128, %v389
    %v450 = vadd.f32 %v129, %v392
    %v451 = vadd.f32 %v130, %v397
    %v452 = vadd.f32 %v131, %v400
    %v453 = vadd.f32 %v132, %v405
    %v454 = vadd.f32 %v133, %v408
    %v455 = vadd.f32 %v134, %v413
    %v456 = vadd.f32 %v135, %v416
    %v457 = vadd.f32 %v136, %v421
    %v458 = vadd.f32 %v137, %v424
    %459 = vst [vmem:[#allocation2] sm:$0xff] %v427
    %460 = vst [vmem:[#allocation2 + $0x8] sm:$0xff] %v428
    %461 = vst [vmem:[#allocation2 + $0x10] sm:$0xff] %v429
    %462 = vst [vmem:[#allocation2 + $0x18] sm:$0xff] %v430
    %463 = vst [vmem:[#allocation2 + $0x20] sm:$0xff] %v431
    %464 = vst [vmem:[#allocation2 + $0x28] sm:$0xff] %v432
    %465 = vst [vmem:[#allocation2 + $0x30] sm:$0xff] %v433
    %466 = vst [vmem:[#allocation2 + $0x38] sm:$0xff] %v434
    %467 = vst [vmem:[#allocation2 + $0x40] sm:$0xff] %v435
    %468 = vst [vmem:[#allocation2 + $0x48] sm:$0xff] %v436
    %469 = vst [vmem:[#allocation2 + $0x50] sm:$0xff] %v437
    %470 = vst [vmem:[#allocation2 + $0x58] sm:$0xff] %v438
    %471 = vst [vmem:[#allocation2 + $0x60] sm:$0xff] %v439
    %472 = vst [vmem:[#allocation2 + $0x68] sm:$0xff] %v440
    %473 = vst [vmem:[#allocation2 + $0x70] sm:$0xff] %v441
    %474 = vst [vmem:[#allocation2 + $0x78] sm:$0xff] %v442
    %475 = vst [vmem:[#allocation2 + $0x80] sm:$0xff] %v443
    %476 = vst [vmem:[#allocation2 + $0x88] sm:$0xff] %v444
    %477 = vst [vmem:[#allocation2 + $0x90] sm:$0xff] %v445
    %478 = vst [vmem:[#allocation2 + $0x98] sm:$0xff] %v446
    %479 = vst [vmem:[#allocation2 + $0xa0] sm:$0xff] %v447
    %480 = vst [vmem:[#allocation2 + $0xa8] sm:$0xff] %v448
    %481 = vst [vmem:[#allocation2 + $0xb0] sm:$0xff] %v449
    %482 = vst [vmem:[#allocation2 + $0xb8] sm:$0xff] %v450
    %483 = vst [vmem:[#allocation2 + $0xc0] sm:$0xff] %v451
    %484 = vst [vmem:[#allocation2 + $0xc8] sm:$0xff] %v452
    %485 = vst [vmem:[#allocation2 + $0xd0] sm:$0xff] %v453
    %486 = vst [vmem:[#allocation2 + $0xd8] sm:$0xff] %v454
    %487 = vst [vmem:[#allocation2 + $0xe0] sm:$0xff] %v455
    %488 = vst [vmem:[#allocation2 + $0xe8] sm:$0xff] %v456
    %489 = vst [vmem:[#allocation2 + $0xf0] sm:$0xff] %v457
    %490 = vst [vmem:[#allocation2 + $0xf8] sm:$0xff] %v458
    // Predicated region
    $region22: #{lightgcn_forward.3} parent=1 // pred_check
      %p491 = pneg %p22
    $region23: #{lightgcn_forward.3} parent=1 // pred_check_branch
      %493 = sbr.rel (%p491) target = $region25
    $region24: #{lightgcn_forward.3} parent=1 // pred_region
      %v494 = vld [vmem:[#allocation2] sm:$0xff]
      %v495 = vld [vmem:[#allocation2 + $0x8] sm:$0xff]
      %v496 = vld [vmem:[#allocation2 + $0x10] sm:$0xff]
      %v497 = vld [vmem:[#allocation2 + $0x18] sm:$0xff]
      %v498 = vld [vmem:[#allocation2 + $0x20] sm:$0xff]
      %v499 = vld [vmem:[#allocation2 + $0x28] sm:$0xff]
      %v500 = vld [vmem:[#allocation2 + $0x30] sm:$0xff]
      %v501 = vld [vmem:[#allocation2 + $0x38] sm:$0xff]
      %v502 = vld [vmem:[#allocation2 + $0x40] sm:$0xff]
      %v503 = vld [vmem:[#allocation2 + $0x48] sm:$0xff]
      %v504 = vld [vmem:[#allocation2 + $0x50] sm:$0xff]
      %v505 = vld [vmem:[#allocation2 + $0x58] sm:$0xff]
      %v506 = vld [vmem:[#allocation2 + $0x60] sm:$0xff]
      %v507 = vld [vmem:[#allocation2 + $0x68] sm:$0xff]
      %v508 = vld [vmem:[#allocation2 + $0x70] sm:$0xff]
      %v509 = vld [vmem:[#allocation2 + $0x78] sm:$0xff]
      %v510 = vld [vmem:[#allocation2 + $0x80] sm:$0xff]
      %v511 = vld [vmem:[#allocation2 + $0x88] sm:$0xff]
      %v512 = vld [vmem:[#allocation2 + $0x90] sm:$0xff]
      %v513 = vld [vmem:[#allocation2 + $0x98] sm:$0xff]
      %v514 = vld [vmem:[#allocation2 + $0xa0] sm:$0xff]
      %v515 = vld [vmem:[#allocation2 + $0xa8] sm:$0xff]
      %v516 = vld [vmem:[#allocation2 + $0xb0] sm:$0xff]
      %v517 = vld [vmem:[#allocation2 + $0xb8] sm:$0xff]
      %v518 = vld [vmem:[#allocation2 + $0xc0] sm:$0xff]
      %v519 = vld [vmem:[#allocation2 + $0xc8] sm:$0xff]
      %v520 = vld [vmem:[#allocation2 + $0xd0] sm:$0xff]
      %v521 = vld [vmem:[#allocation2 + $0xd8] sm:$0xff]
      %v522 = vld [vmem:[#allocation2 + $0xe0] sm:$0xff]
      %v523 = vld [vmem:[#allocation2 + $0xe8] sm:$0xff]
      %v524 = vld [vmem:[#allocation2 + $0xf0] sm:$0xff]
      %v525 = vld [vmem:[#allocation2 + $0xf8] sm:$0xff]
      %v526 = vld [vmem:[%s1] sm:$0xff]
      %v527 = vld [vmem:[%s1 + $0x8] sm:$0xff]
      %v528 = vld [vmem:[%s1 + $0x10] sm:$0xff]
      %v529 = vld [vmem:[%s1 + $0x18] sm:$0xff]
      %v530 = vld [vmem:[%s1 + $0x20] sm:$0xff]
      %v531 = vld [vmem:[%s1 + $0x28] sm:$0xff]
      %v532 = vld [vmem:[%s1 + $0x30] sm:$0xff]
      %v533 = vld [vmem:[%s1 + $0x38] sm:$0xff]
      %v534 = vld [vmem:[%s1 + $0x40] sm:$0xff]
      %v535 = vld [vmem:[%s1 + $0x48] sm:$0xff]
      %v536 = vld [vmem:[%s1 + $0x50] sm:$0xff]
      %v537 = vld [vmem:[%s1 + $0x58] sm:$0xff]
      %v538 = vld [vmem:[%s1 + $0x60] sm:$0xff]
      %v539 = vld [vmem:[%s1 + $0x68] sm:$0xff]
      %v540 = vld [vmem:[%s1 + $0x70] sm:$0xff]
      %v541 = vld [vmem:[%s1 + $0x78] sm:$0xff]
      %v542 = vld [vmem:[%s1 + $0x80] sm:$0xff]
      %v543 = vld [vmem:[%s1 + $0x88] sm:$0xff]
      %v544 = vld [vmem:[%s1 + $0x90] sm:$0xff]
      %v545 = vld [vmem:[%s1 + $0x98] sm:$0xff]
      %v546 = vld [vmem:[%s1 + $0xa0] sm:$0xff]
      %v547 = vld [vmem:[%s1 + $0xa8] sm:$0xff]
      %v548 = vld [vmem:[%s1 + $0xb0] sm:$0xff]
      %v549 = vld [vmem:[%s1 + $0xb8] sm:$0xff]
      %v550 = vld [vmem:[%s1 + $0xc0] sm:$0xff]
      %v551 = vld [vmem:[%s1 + $0xc8] sm:$0xff]
      %v552 = vld [vmem:[%s1 + $0xd0] sm:$0xff]
      %v553 = vld [vmem:[%s1 + $0xd8] sm:$0xff]
      %v554 = vld [vmem:[%s1 + $0xe0] sm:$0xff]
      %v555 = vld [vmem:[%s1 + $0xe8] sm:$0xff]
      %v556 = vld [vmem:[%s1 + $0xf0] sm:$0xff]
      %v557 = vld [vmem:[%s1 + $0xf8] sm:$0xff]
      %559 = vset.pattern.permute.xlu0 0
      %560 = vperm.xlu0 %559, %v526
      %v561 = vpop.permute.xlu0 %560
      %564 = vset.pattern.permute.xlu0 0
      %565 = vperm.xlu0 %564, %v527
      %v566 = vpop.permute.xlu0 %565
      %569 = vset.pattern.permute.xlu0 0
      %570 = vperm.xlu0 %569, %v528
      %v571 = vpop.permute.xlu0 %570
      %574 = vset.pattern.permute.xlu0 0
      %575 = vperm.xlu0 %574, %v529
      %v576 = vpop.permute.xlu0 %575
      %579 = vset.pattern.permute.xlu0 0
      %580 = vperm.xlu0 %579, %v530
      %v581 = vpop.permute.xlu0 %580
      %584 = vset.pattern.permute.xlu0 0
      %585 = vperm.xlu0 %584, %v531
      %v586 = vpop.permute.xlu0 %585
      %589 = vset.pattern.permute.xlu0 0
      %590 = vperm.xlu0 %589, %v532
      %v591 = vpop.permute.xlu0 %590
      %594 = vset.pattern.permute.xlu0 0
      %595 = vperm.xlu0 %594, %v533
      %v596 = vpop.permute.xlu0 %595
      %599 = vset.pattern.permute.xlu0 0
      %600 = vperm.xlu0 %599, %v534
      %v601 = vpop.permute.xlu0 %600
      %604 = vset.pattern.permute.xlu0 0
      %605 = vperm.xlu0 %604, %v535
      %v606 = vpop.permute.xlu0 %605
      %609 = vset.pattern.permute.xlu0 0
      %610 = vperm.xlu0 %609, %v536
      %v611 = vpop.permute.xlu0 %610
      %614 = vset.pattern.permute.xlu0 0
      %615 = vperm.xlu0 %614, %v537
      %v616 = vpop.permute.xlu0 %615
      %619 = vset.pattern.permute.xlu0 0
      %620 = vperm.xlu0 %619, %v538
      %v621 = vpop.permute.xlu0 %620
      %624 = vset.pattern.permute.xlu0 0
      %625 = vperm.xlu0 %624, %v539
      %v626 = vpop.permute.xlu0 %625
      %629 = vset.pattern.permute.xlu0 0
      %630 = vperm.xlu0 %629, %v540
      %v631 = vpop.permute.xlu0 %630
      %634 = vset.pattern.permute.xlu0 0
      %635 = vperm.xlu0 %634, %v541
      %v636 = vpop.permute.xlu0 %635
      %639 = vset.pattern.permute.xlu0 0
      %640 = vperm.xlu0 %639, %v542
      %v641 = vpop.permute.xlu0 %640
      %644 = vset.pattern.permute.xlu0 0
      %645 = vperm.xlu0 %644, %v543
      %v646 = vpop.permute.xlu0 %645
      %649 = vset.pattern.permute.xlu0 0
      %650 = vperm.xlu0 %649, %v544
      %v651 = vpop.permute.xlu0 %650
      %654 = vset.pattern.permute.xlu0 0
      %655 = vperm.xlu0 %654, %v545
      %v656 = vpop.permute.xlu0 %655
      %659 = vset.pattern.permute.xlu0 0
      %660 = vperm.xlu0 %659, %v546
      %v661 = vpop.permute.xlu0 %660
      %664 = vset.pattern.permute.xlu0 0
      %665 = vperm.xlu0 %664, %v547
      %v666 = vpop.permute.xlu0 %665
      %669 = vset.pattern.permute.xlu0 0
      %670 = vperm.xlu0 %669, %v548
      %v671 = vpop.permute.xlu0 %670
      %674 = vset.pattern.permute.xlu0 0
      %675 = vperm.xlu0 %674, %v549
      %v676 = vpop.permute.xlu0 %675
      %679 = vset.pattern.permute.xlu0 0
      %680 = vperm.xlu0 %679, %v550
      %v681 = vpop.permute.xlu0 %680
      %684 = vset.pattern.permute.xlu0 0
      %685 = vperm.xlu0 %684, %v551
      %v686 = vpop.permute.xlu0 %685
      %689 = vset.pattern.permute.xlu0 0
      %690 = vperm.xlu0 %689, %v552
      %v691 = vpop.permute.xlu0 %690
      %694 = vset.pattern.permute.xlu0 0
      %695 = vperm.xlu0 %694, %v553
      %v696 = vpop.permute.xlu0 %695
      %699 = vset.pattern.permute.xlu0 0
      %700 = vperm.xlu0 %699, %v554
      %v701 = vpop.permute.xlu0 %700
      %704 = vset.pattern.permute.xlu0 0
      %705 = vperm.xlu0 %704, %v555
      %v706 = vpop.permute.xlu0 %705
      %709 = vset.pattern.permute.xlu0 0
      %710 = vperm.xlu0 %709, %v556
      %v711 = vpop.permute.xlu0 %710
      %714 = vset.pattern.permute.xlu0 0
      %715 = vperm.xlu0 %714, %v557
      %v716 = vpop.permute.xlu0 %715
      %v718 = vmul.f32 %v494, %v561
      %v719 = vmul.f32 %v495, %v566
      %v720 = vmul.f32 %v496, %v571
      %v721 = vmul.f32 %v497, %v576
      %v722 = vmul.f32 %v498, %v581
      %v723 = vmul.f32 %v499, %v586
      %v724 = vmul.f32 %v500, %v591
      %v725 = vmul.f32 %v501, %v596
      %v726 = vmul.f32 %v502, %v601
      %v727 = vmul.f32 %v503, %v606
      %v728 = vmul.f32 %v504, %v611
      %v729 = vmul.f32 %v505, %v616
      %v730 = vmul.f32 %v506, %v621
      %v731 = vmul.f32 %v507, %v626
      %v732 = vmul.f32 %v508, %v631
      %v733 = vmul.f32 %v509, %v636
      %v734 = vmul.f32 %v510, %v641
      %v735 = vmul.f32 %v511, %v646
      %v736 = vmul.f32 %v512, %v651
      %v737 = vmul.f32 %v513, %v656
      %v738 = vmul.f32 %v514, %v661
      %v739 = vmul.f32 %v515, %v666
      %v740 = vmul.f32 %v516, %v671
      %v741 = vmul.f32 %v517, %v676
      %v742 = vmul.f32 %v518, %v681
      %v743 = vmul.f32 %v519, %v686
      %v744 = vmul.f32 %v520, %v691
      %v745 = vmul.f32 %v521, %v696
      %v746 = vmul.f32 %v522, %v701
      %v747 = vmul.f32 %v523, %v706
      %v748 = vmul.f32 %v524, %v711
      %v749 = vmul.f32 %v525, %v716
      %750 = vst [vmem:[#allocation2] sm:$0xff] %v718
      %751 = vst [vmem:[#allocation2 + $0x8] sm:$0xff] %v719
      %752 = vst [vmem:[#allocation2 + $0x10] sm:$0xff] %v720
      %753 = vst [vmem:[#allocation2 + $0x18] sm:$0xff] %v721
      %754 = vst [vmem:[#allocation2 + $0x20] sm:$0xff] %v722
      %755 = vst [vmem:[#allocation2 + $0x28] sm:$0xff] %v723
      %756 = vst [vmem:[#allocation2 + $0x30] sm:$0xff] %v724
      %757 = vst [vmem:[#allocation2 + $0x38] sm:$0xff] %v725
      %758 = vst [vmem:[#allocation2 + $0x40] sm:$0xff] %v726
      %759 = vst [vmem:[#allocation2 + $0x48] sm:$0xff] %v727
      %760 = vst [vmem:[#allocation2 + $0x50] sm:$0xff] %v728
      %761 = vst [vmem:[#allocation2 + $0x58] sm:$0xff] %v729
      %762 = vst [vmem:[#allocation2 + $0x60] sm:$0xff] %v730
      %763 = vst [vmem:[#allocation2 + $0x68] sm:$0xff] %v731
      %764 = vst [vmem:[#allocation2 + $0x70] sm:$0xff] %v732
      %765 = vst [vmem:[#allocation2 + $0x78] sm:$0xff] %v733
      %766 = vst [vmem:[#allocation2 + $0x80] sm:$0xff] %v734
      %767 = vst [vmem:[#allocation2 + $0x88] sm:$0xff] %v735
      %768 = vst [vmem:[#allocation2 + $0x90] sm:$0xff] %v736
      %769 = vst [vmem:[#allocation2 + $0x98] sm:$0xff] %v737
      %770 = vst [vmem:[#allocation2 + $0xa0] sm:$0xff] %v738
      %771 = vst [vmem:[#allocation2 + $0xa8] sm:$0xff] %v739
      %772 = vst [vmem:[#allocation2 + $0xb0] sm:$0xff] %v740
      %773 = vst [vmem:[#allocation2 + $0xb8] sm:$0xff] %v741
      %774 = vst [vmem:[#allocation2 + $0xc0] sm:$0xff] %v742
      %775 = vst [vmem:[#allocation2 + $0xc8] sm:$0xff] %v743
      %776 = vst [vmem:[#allocation2 + $0xd0] sm:$0xff] %v744
      %777 = vst [vmem:[#allocation2 + $0xd8] sm:$0xff] %v745
      %778 = vst [vmem:[#allocation2 + $0xe0] sm:$0xff] %v746
      %779 = vst [vmem:[#allocation2 + $0xe8] sm:$0xff] %v747
      %780 = vst [vmem:[#allocation2 + $0xf0] sm:$0xff] %v748
      %781 = vst [vmem:[#allocation2 + $0xf8] sm:$0xff] %v749
      %v782 = vpack.c.bf16 %v719, %v718
      %v783 = vpack.c.bf16 %v721, %v720
      %v784 = vpack.c.bf16 %v723, %v722
      %v785 = vpack.c.bf16 %v725, %v724
      %v786 = vpack.c.bf16 %v727, %v726
      %v787 = vpack.c.bf16 %v729, %v728
      %v788 = vpack.c.bf16 %v731, %v730
      %v789 = vpack.c.bf16 %v733, %v732
      %v790 = vpack.c.bf16 %v735, %v734
      %v791 = vpack.c.bf16 %v737, %v736
      %v792 = vpack.c.bf16 %v739, %v738
      %v793 = vpack.c.bf16 %v741, %v740
      %v794 = vpack.c.bf16 %v743, %v742
      %v795 = vpack.c.bf16 %v745, %v744
      %v796 = vpack.c.bf16 %v747, %v746
      %v797 = vpack.c.bf16 %v749, %v748
      %v814 = vunpack.c.l.b16 %v782
      %v815 = vunpack.c.h.b16 %v782
      %v816 = vunpack.c.l.b16 %v783
      %v817 = vunpack.c.h.b16 %v783
      %v818 = vunpack.c.l.b16 %v784
      %v819 = vunpack.c.h.b16 %v784
      %v820 = vunpack.c.l.b16 %v785
      %v821 = vunpack.c.h.b16 %v785
      %v822 = vunpack.c.l.b16 %v786
      %v823 = vunpack.c.h.b16 %v786
      %v824 = vunpack.c.l.b16 %v787
      %v825 = vunpack.c.h.b16 %v787
      %v826 = vunpack.c.l.b16 %v788
      %v827 = vunpack.c.h.b16 %v788
      %v828 = vunpack.c.l.b16 %v789
      %v829 = vunpack.c.h.b16 %v789
      %v830 = vunpack.c.l.b16 %v790
      %v831 = vunpack.c.h.b16 %v790
      %v832 = vunpack.c.l.b16 %v791
      %v833 = vunpack.c.h.b16 %v791
      %v834 = vunpack.c.l.b16 %v792
      %v835 = vunpack.c.h.b16 %v792
      %v836 = vunpack.c.l.b16 %v793
      %v837 = vunpack.c.h.b16 %v793
      %v838 = vunpack.c.l.b16 %v794
      %v839 = vunpack.c.h.b16 %v794
      %v840 = vunpack.c.l.b16 %v795
      %v841 = vunpack.c.h.b16 %v795
      %v842 = vunpack.c.l.b16 %v796
      %v843 = vunpack.c.h.b16 %v796
      %v844 = vunpack.c.l.b16 %v797
      %v845 = vunpack.c.h.b16 %v797
      %v846 = vpack.c.b16 %v814, %v814
      %v847 = vpack.c.b16 %v815, %v815
      %v848 = vpack.c.b16 %v816, %v816
      %v849 = vpack.c.b16 %v817, %v817
      %v850 = vpack.c.b16 %v818, %v818
      %v851 = vpack.c.b16 %v819, %v819
      %v852 = vpack.c.b16 %v820, %v820
      %v853 = vpack.c.b16 %v821, %v821
      %v854 = vpack.c.b16 %v822, %v822
      %v855 = vpack.c.b16 %v823, %v823
      %v856 = vpack.c.b16 %v824, %v824
      %v857 = vpack.c.b16 %v825, %v825
      %v858 = vpack.c.b16 %v826, %v826
      %v859 = vpack.c.b16 %v827, %v827
      %v860 = vpack.c.b16 %v828, %v828
      %v861 = vpack.c.b16 %v829, %v829
      %v862 = vpack.c.b16 %v830, %v830
      %v863 = vpack.c.b16 %v831, %v831
      %v864 = vpack.c.b16 %v832, %v832
      %v865 = vpack.c.b16 %v833, %v833
      %v866 = vpack.c.b16 %v834, %v834
      %v867 = vpack.c.b16 %v835, %v835
      %v868 = vpack.c.b16 %v836, %v836
      %v869 = vpack.c.b16 %v837, %v837
      %v870 = vpack.c.b16 %v838, %v838
      %v871 = vpack.c.b16 %v839, %v839
      %v872 = vpack.c.b16 %v840, %v840
      %v873 = vpack.c.b16 %v841, %v841
      %v874 = vpack.c.b16 %v842, %v842
      %v875 = vpack.c.b16 %v843, %v843
      %v876 = vpack.c.b16 %v844, %v844
      %v877 = vpack.c.b16 %v845, %v845
      %910 = vst [vmem:[%s5] sm:$0xf] %v846
      %911 = vst [vmem:[%s5 + $0x4] sm:$0xf] %v847
      %912 = vst [vmem:[%s5 + $0x8] sm:$0xf] %v848
      %913 = vst [vmem:[%s5 + $0xc] sm:$0xf] %v849
      %914 = vst [vmem:[%s5 + $0x10] sm:$0xf] %v850
      %915 = vst [vmem:[%s5 + $0x14] sm:$0xf] %v851
      %916 = vst [vmem:[%s5 + $0x18] sm:$0xf] %v852
      %917 = vst [vmem:[%s5 + $0x1c] sm:$0xf] %v853
      %918 = vst [vmem:[%s5 + $0x20] sm:$0xf] %v854
      %919 = vst [vmem:[%s5 + $0x24] sm:$0xf] %v855
      %920 = vst [vmem:[%s5 + $0x28] sm:$0xf] %v856
      %921 = vst [vmem:[%s5 + $0x2c] sm:$0xf] %v857
      %922 = vst [vmem:[%s5 + $0x30] sm:$0xf] %v858
      %923 = vst [vmem:[%s5 + $0x34] sm:$0xf] %v859
      %924 = vst [vmem:[%s5 + $0x38] sm:$0xf] %v860
      %925 = vst [vmem:[%s5 + $0x3c] sm:$0xf] %v861
      %926 = vst [vmem:[%s5 + $0x40] sm:$0xf] %v862
      %927 = vst [vmem:[%s5 + $0x44] sm:$0xf] %v863
      %928 = vst [vmem:[%s5 + $0x48] sm:$0xf] %v864
      %929 = vst [vmem:[%s5 + $0x4c] sm:$0xf] %v865
      %930 = vst [vmem:[%s5 + $0x50] sm:$0xf] %v866
      %931 = vst [vmem:[%s5 + $0x54] sm:$0xf] %v867
      %932 = vst [vmem:[%s5 + $0x58] sm:$0xf] %v868
      %933 = vst [vmem:[%s5 + $0x5c] sm:$0xf] %v869
      %934 = vst [vmem:[%s5 + $0x60] sm:$0xf] %v870
      %935 = vst [vmem:[%s5 + $0x64] sm:$0xf] %v871
      %936 = vst [vmem:[%s5 + $0x68] sm:$0xf] %v872
      %937 = vst [vmem:[%s5 + $0x6c] sm:$0xf] %v873
      %938 = vst [vmem:[%s5 + $0x70] sm:$0xf] %v874
      %939 = vst [vmem:[%s5 + $0x74] sm:$0xf] %v875
      %940 = vst [vmem:[%s5 + $0x78] sm:$0xf] %v876
      %941 = vst [vmem:[%s5 + $0x7c] sm:$0xf] %v877
      %v942 = vld [vmem:[%s3] sm:$0xff]
      %v943 = vld [vmem:[%s3 + $0x8] sm:$0xff]
      %v944 = vld [vmem:[%s3 + $0x10] sm:$0xff]
      %v945 = vld [vmem:[%s3 + $0x18] sm:$0xff]
      %v946 = vld [vmem:[%s3 + $0x20] sm:$0xff]
      %v947 = vld [vmem:[%s3 + $0x28] sm:$0xff]
      %v948 = vld [vmem:[%s3 + $0x30] sm:$0xff]
      %v949 = vld [vmem:[%s3 + $0x38] sm:$0xff]
      %v950 = vld [vmem:[%s3 + $0x40] sm:$0xff]
      %v951 = vld [vmem:[%s3 + $0x48] sm:$0xff]
      %v952 = vld [vmem:[%s3 + $0x50] sm:$0xff]
      %v953 = vld [vmem:[%s3 + $0x58] sm:$0xff]
      %v954 = vld [vmem:[%s3 + $0x60] sm:$0xff]
      %v955 = vld [vmem:[%s3 + $0x68] sm:$0xff]
      %v956 = vld [vmem:[%s3 + $0x70] sm:$0xff]
      %v957 = vld [vmem:[%s3 + $0x78] sm:$0xff]
      %v958 = vld [vmem:[%s3 + $0x80] sm:$0xff]
      %v959 = vld [vmem:[%s3 + $0x88] sm:$0xff]
      %v960 = vld [vmem:[%s3 + $0x90] sm:$0xff]
      %v961 = vld [vmem:[%s3 + $0x98] sm:$0xff]
      %v962 = vld [vmem:[%s3 + $0xa0] sm:$0xff]
      %v963 = vld [vmem:[%s3 + $0xa8] sm:$0xff]
      %v964 = vld [vmem:[%s3 + $0xb0] sm:$0xff]
      %v965 = vld [vmem:[%s3 + $0xb8] sm:$0xff]
      %v966 = vld [vmem:[%s3 + $0xc0] sm:$0xff]
      %v967 = vld [vmem:[%s3 + $0xc8] sm:$0xff]
      %v968 = vld [vmem:[%s3 + $0xd0] sm:$0xff]
      %v969 = vld [vmem:[%s3 + $0xd8] sm:$0xff]
      %v970 = vld [vmem:[%s3 + $0xe0] sm:$0xff]
      %v971 = vld [vmem:[%s3 + $0xe8] sm:$0xff]
      %v972 = vld [vmem:[%s3 + $0xf0] sm:$0xff]
      %v973 = vld [vmem:[%s3 + $0xf8] sm:$0xff]
      %v974 = vadd.f32 %v942, %v718
      %v975 = vadd.f32 %v943, %v719
      %v976 = vadd.f32 %v944, %v720
      %v977 = vadd.f32 %v945, %v721
      %v978 = vadd.f32 %v946, %v722
      %v979 = vadd.f32 %v947, %v723
      %v980 = vadd.f32 %v948, %v724
      %v981 = vadd.f32 %v949, %v725
      %v982 = vadd.f32 %v950, %v726
      %v983 = vadd.f32 %v951, %v727
      %v984 = vadd.f32 %v952, %v728
      %v985 = vadd.f32 %v953, %v729
      %v986 = vadd.f32 %v954, %v730
      %v987 = vadd.f32 %v955, %v731
      %v988 = vadd.f32 %v956, %v732
      %v989 = vadd.f32 %v957, %v733
      %v990 = vadd.f32 %v958, %v734
      %v991 = vadd.f32 %v959, %v735
      %v992 = vadd.f32 %v960, %v736
      %v993 = vadd.f32 %v961, %v737
      %v994 = vadd.f32 %v962, %v738
      %v995 = vadd.f32 %v963, %v739
      %v996 = vadd.f32 %v964, %v740
      %v997 = vadd.f32 %v965, %v741
      %v998 = vadd.f32 %v966, %v742
      %v999 = vadd.f32 %v967, %v743
      %v1000 = vadd.f32 %v968, %v744
      %v1001 = vadd.f32 %v969, %v745
      %v1002 = vadd.f32 %v970, %v746
      %v1003 = vadd.f32 %v971, %v747
      %v1004 = vadd.f32 %v972, %v748
      %v1005 = vadd.f32 %v973, %v749
      %1006 = vst [vmem:[%s6] sm:$0xff] %v974
      %1007 = vst [vmem:[%s6 + $0x8] sm:$0xff] %v975
      %1008 = vst [vmem:[%s6 + $0x10] sm:$0xff] %v976
      %1009 = vst [vmem:[%s6 + $0x18] sm:$0xff] %v977
      %1010 = vst [vmem:[%s6 + $0x20] sm:$0xff] %v978
      %1011 = vst [vmem:[%s6 + $0x28] sm:$0xff] %v979
      %1012 = vst [vmem:[%s6 + $0x30] sm:$0xff] %v980
      %1013 = vst [vmem:[%s6 + $0x38] sm:$0xff] %v981
      %1014 = vst [vmem:[%s6 + $0x40] sm:$0xff] %v982
      %1015 = vst [vmem:[%s6 + $0x48] sm:$0xff] %v983
      %1016 = vst [vmem:[%s6 + $0x50] sm:$0xff] %v984
      %1017 = vst [vmem:[%s6 + $0x58] sm:$0xff] %v985
      %1018 = vst [vmem:[%s6 + $0x60] sm:$0xff] %v986
      %1019 = vst [vmem:[%s6 + $0x68] sm:$0xff] %v987
      %1020 = vst [vmem:[%s6 + $0x70] sm:$0xff] %v988
      %1021 = vst [vmem:[%s6 + $0x78] sm:$0xff] %v989
      %1022 = vst [vmem:[%s6 + $0x80] sm:$0xff] %v990
      %1023 = vst [vmem:[%s6 + $0x88] sm:$0xff] %v991
      %1024 = vst [vmem:[%s6 + $0x90] sm:$0xff] %v992
      %1025 = vst [vmem:[%s6 + $0x98] sm:$0xff] %v993
      %1026 = vst [vmem:[%s6 + $0xa0] sm:$0xff] %v994
      %1027 = vst [vmem:[%s6 + $0xa8] sm:$0xff] %v995
      %1028 = vst [vmem:[%s6 + $0xb0] sm:$0xff] %v996
      %1029 = vst [vmem:[%s6 + $0xb8] sm:$0xff] %v997
      %1030 = vst [vmem:[%s6 + $0xc0] sm:$0xff] %v998
      %1031 = vst [vmem:[%s6 + $0xc8] sm:$0xff] %v999
      %1032 = vst [vmem:[%s6 + $0xd0] sm:$0xff] %v1000
      %1033 = vst [vmem:[%s6 + $0xd8] sm:$0xff] %v1001
      %1034 = vst [vmem:[%s6 + $0xe0] sm:$0xff] %v1002
      %1035 = vst [vmem:[%s6 + $0xe8] sm:$0xff] %v1003
      %1036 = vst [vmem:[%s6 + $0xf0] sm:$0xff] %v1004
      %1037 = vst [vmem:[%s6 + $0xf8] sm:$0xff] %v1005
    $region25: #{lightgcn_forward.3} parent=1 // pred_fallthru
      _
    // Predicated region
    $region26: #{lightgcn_forward.3} parent=1 // pred_check
      _
    $region27: #{lightgcn_forward.3} parent=1 // pred_check_branch
      %1039 = sbr.rel (0) target = $region29
    $region28: #{lightgcn_forward.3} parent=1 // pred_region
      %s1041 = ssub.s32 4096, 4096
      %1042 = vsyncadd [#allocation3], %s1041
      %s1043 = sshll.u32 [#allocation2], 4
      %s1044 = int_to_ptr.vmem [resolvable:$true] %s1043
      %1049 = dma.vmem_to_hbm [thread:$0]  %s1044, 4096, %s4, [#allocation3], 128, 128, 8
    $region29: #{lightgcn_forward.3} parent=1 // pred_fallthru
      _
    // Predicated region
    $region30: #{lightgcn_forward.3} parent=1 // pred_check
      _
    $region31: #{lightgcn_forward.3} parent=1 // pred_check_branch
      %1051 = sbr.rel (0) target = $region33
    $region32: #{lightgcn_forward.3} parent=1 // pred_region
      _
    $region33: #{lightgcn_forward.3} parent=1 // pred_fallthru
      _
    // Predicated region
    $region34: #{lightgcn_forward.3} parent=1 // pred_check
      _
    $region35: #{lightgcn_forward.3} parent=1 // pred_check_branch
      %1053 = sbr.rel (0) target = $region37
    $region36: #{lightgcn_forward.3} parent=1 // pred_region
      _
    $region37: #{lightgcn_forward.3} parent=1 // pred_fallthru
      _
    // Predicated region
    $region38: #{lightgcn_forward.3} parent=1 // pred_check
      _
    $region39: #{lightgcn_forward.3} parent=1 // pred_check_branch
      %1055 = sbr.rel (0) target = $region41
    $region40: #{lightgcn_forward.3} parent=1 // pred_region
      %1056 = dma.done [#allocation3], 4096
    $region41: #{lightgcn_forward.3} parent=1 // pred_fallthru
      _
    // Predicated region
    $region42: #{lightgcn_forward.3} parent=1 // pred_check
      _
    $region43: #{lightgcn_forward.3} parent=1 // pred_check_branch
      %1058 = sbr.rel (0) target = $region45
    $region44: #{lightgcn_forward.3} parent=1 // pred_region
      _
    $region45: #{lightgcn_forward.3} parent=1 // pred_fallthru
      _
    // Predicated region
    $region46: #{lightgcn_forward.3} parent=1 // pred_check
      _
    $region47: #{lightgcn_forward.3} parent=1 // pred_check_branch
      %1060 = sbr.rel (0) target = $region49
    $region48: #{lightgcn_forward.3} parent=1 // pred_region
      _
    $region49: #{lightgcn_forward.3} parent=1 // pred_fallthru
      _
    %1061 = vsyncpa [#allocation3], 1

// kernel: lightgcn_forward.5
$region0: #{lightgcn_forward.5}
  #allocation0 [shape = 'u32[]', space=smem, size = 0x4, offset = 0x4, fixed_abs, tag = 'smem constant byte address 0x4 - core index']
  #allocation1 [shape = 'u32[144,128]{1,0:T(1,128)}', space=vmem, size = 0x12000, scoped, tag = 'internal scratch']
  %s0 = inlined_call_operand.vmem [shape: s8[256,256], index: 0, kind: input, shape index: {}]
  %s1 = inlined_call_operand.vmem [shape: f32[256,1], index: 1, kind: input, shape index: {}]
  %s2 = inlined_call_operand.vmem [shape: bf16[256,128], index: 2, kind: input, shape index: {}]
  %s3 = inlined_call_operand.vmem [shape: f32[256,128], index: 3, kind: input, shape index: {}, may-alias: {3,6}]
  %s4 = inlined_call_operand.hbm [shape: f32[256,128], index: 4, kind: output, shape index: {0}]
  %s5 = inlined_call_operand.hbm [shape: bf16[256,128], index: 5, kind: output, shape index: {1}]
  %s6 = inlined_call_operand.vmem [shape: f32[256,128], index: 6, kind: output, shape index: {2}, may-alias: {3,6}]
  %7 = xla_tuple %s4, %s5, %s6
  %s8 = sld [smem:[#allocation0]]
  $region50: #{lightgcn_forward.5} parent=0
    _
  %s10 = ssub.s32 1, %s8
  %s11 = scalar_select 0, %s10, %s8
  $region1: #{lightgcn_forward.5} parent=0
    #allocation2 [shape = 'u8[131072]{0}', space=vmem, size = 0x20000, scoped, tag = 'output window, operand 0, single buffered']
    #allocation3 [shape = 's32[1]{0}', space=sflag, size = 0x4, scoped, tag = 'scoped memory for lightgcn_forward.5']
    #allocation4 [shape = 'u8[65536]{0}', space=vmem, size = 0x10000, scoped, tag = 'output window, operand 1, single buffered']
    #allocation5 [shape = 's32[1]{0}', space=sflag, size = 0x4, scoped, tag = 'scoped memory for lightgcn_forward.5']
    %12 = vsyncpa [#allocation3], 0
    %13 = vsyncpa [#allocation5], 0
    // Predicated region
    $region2: #{lightgcn_forward.5} parent=1 // pred_check
      _
    $region3: #{lightgcn_forward.5} parent=1 // pred_check_branch
      %15 = sbr.rel (0) target = $region5
    $region4: #{lightgcn_forward.5} parent=1 // pred_region
      _
    $region5: #{lightgcn_forward.5} parent=1 // pred_fallthru
      _
    // Predicated region
    $region6: #{lightgcn_forward.5} parent=1 // pred_check
      _
    $region7: #{lightgcn_forward.5} parent=1 // pred_check_branch
      %17 = sbr.rel (0) target = $region9
    $region8: #{lightgcn_forward.5} parent=1 // pred_region
      _
    $region9: #{lightgcn_forward.5} parent=1 // pred_fallthru
      _
    // Predicated region
    $region10: #{lightgcn_forward.5} parent=1 // pred_check
      _
    $region11: #{lightgcn_forward.5} parent=1 // pred_check_branch
      %19 = sbr.rel (0) target = $region13
    $region12: #{lightgcn_forward.5} parent=1 // pred_region
      _
    $region13: #{lightgcn_forward.5} parent=1 // pred_fallthru
      _
    // Predicated region
    $region14: #{lightgcn_forward.5} parent=1 // pred_check
      _
    $region15: #{lightgcn_forward.5} parent=1 // pred_check_branch
      %21 = sbr.rel (0) target = $region17
    $region16: #{lightgcn_forward.5} parent=1 // pred_region
      _
    $region17: #{lightgcn_forward.5} parent=1 // pred_fallthru
      _
    %p23 = scmp.eq.s32.totalorder 0, 0
    // Predicated region
    $region18: #{lightgcn_forward.5} parent=1 // pred_check
      %p24 = pneg %p23
    $region19: #{lightgcn_forward.5} parent=1 // pred_check_branch
      %26 = sbr.rel (%p24) target = $region21
    $region20: #{lightgcn_forward.5} parent=1 // pred_region
      %27 = vst [vmem:[#allocation2] sm:$0xff] 0.0
      %28 = vst [vmem:[#allocation2 + $0x8] sm:$0xff] 0.0
      %29 = vst [vmem:[#allocation2 + $0x10] sm:$0xff] 0.0
      %30 = vst [vmem:[#allocation2 + $0x18] sm:$0xff] 0.0
      %31 = vst [vmem:[#allocation2 + $0x20] sm:$0xff] 0.0
      %32 = vst [vmem:[#allocation2 + $0x28] sm:$0xff] 0.0
      %33 = vst [vmem:[#allocation2 + $0x30] sm:$0xff] 0.0
      %34 = vst [vmem:[#allocation2 + $0x38] sm:$0xff] 0.0
      %35 = vst [vmem:[#allocation2 + $0x40] sm:$0xff] 0.0
      %36 = vst [vmem:[#allocation2 + $0x48] sm:$0xff] 0.0
      %37 = vst [vmem:[#allocation2 + $0x50] sm:$0xff] 0.0
      %38 = vst [vmem:[#allocation2 + $0x58] sm:$0xff] 0.0
      %39 = vst [vmem:[#allocation2 + $0x60] sm:$0xff] 0.0
      %40 = vst [vmem:[#allocation2 + $0x68] sm:$0xff] 0.0
      %41 = vst [vmem:[#allocation2 + $0x70] sm:$0xff] 0.0
      %42 = vst [vmem:[#allocation2 + $0x78] sm:$0xff] 0.0
      %43 = vst [vmem:[#allocation2 + $0x80] sm:$0xff] 0.0
      %44 = vst [vmem:[#allocation2 + $0x88] sm:$0xff] 0.0
      %45 = vst [vmem:[#allocation2 + $0x90] sm:$0xff] 0.0
      %46 = vst [vmem:[#allocation2 + $0x98] sm:$0xff] 0.0
      %47 = vst [vmem:[#allocation2 + $0xa0] sm:$0xff] 0.0
      %48 = vst [vmem:[#allocation2 + $0xa8] sm:$0xff] 0.0
      %49 = vst [vmem:[#allocation2 + $0xb0] sm:$0xff] 0.0
      %50 = vst [vmem:[#allocation2 + $0xb8] sm:$0xff] 0.0
      %51 = vst [vmem:[#allocation2 + $0xc0] sm:$0xff] 0.0
      %52 = vst [vmem:[#allocation2 + $0xc8] sm:$0xff] 0.0
      %53 = vst [vmem:[#allocation2 + $0xd0] sm:$0xff] 0.0
      %54 = vst [vmem:[#allocation2 + $0xd8] sm:$0xff] 0.0
      %55 = vst [vmem:[#allocation2 + $0xe0] sm:$0xff] 0.0
      %56 = vst [vmem:[#allocation2 + $0xe8] sm:$0xff] 0.0
      %57 = vst [vmem:[#allocation2 + $0xf0] sm:$0xff] 0.0
      %58 = vst [vmem:[#allocation2 + $0xf8] sm:$0xff] 0.0
    $region21: #{lightgcn_forward.5} parent=1 // pred_fallthru
      _
    %v59 = vld [vmem:[%s0] sm:$0xff]
    %v60 = vld [vmem:[%s0 + $0x8] sm:$0xff]
    %v61 = vld [vmem:[%s0 + $0x10] sm:$0xff]
    %v62 = vld [vmem:[%s0 + $0x18] sm:$0xff]
    %v63 = vld [vmem:[%s0 + $0x20] sm:$0xff]
    %v64 = vld [vmem:[%s0 + $0x28] sm:$0xff]
    %v65 = vld [vmem:[%s0 + $0x30] sm:$0xff]
    %v66 = vld [vmem:[%s0 + $0x38] sm:$0xff]
    %v67 = vld [vmem:[%s0 + $0x40] sm:$0xff]
    %v68 = vld [vmem:[%s0 + $0x48] sm:$0xff]
    %v69 = vld [vmem:[%s0 + $0x50] sm:$0xff]
    %v70 = vld [vmem:[%s0 + $0x58] sm:$0xff]
    %v71 = vld [vmem:[%s0 + $0x60] sm:$0xff]
    %v72 = vld [vmem:[%s0 + $0x68] sm:$0xff]
    %v73 = vld [vmem:[%s0 + $0x70] sm:$0xff]
    %v74 = vld [vmem:[%s0 + $0x78] sm:$0xff]
    %v75 = vunpack.c.l.s8.bf16 %v59
    %v76 = vunpack.c.l.s8.bf16 %v60
    %v77 = vunpack.c.h.s8.bf16 %v59
    %v78 = vunpack.c.h.s8.bf16 %v60
    %v79 = vunpack.c.l.s8.bf16 %v61
    %v80 = vunpack.c.l.s8.bf16 %v62
    %v81 = vunpack.c.h.s8.bf16 %v61
    %v82 = vunpack.c.h.s8.bf16 %v62
    %v83 = vunpack.c.l.s8.bf16 %v63
    %v84 = vunpack.c.l.s8.bf16 %v64
    %v85 = vunpack.c.h.s8.bf16 %v63
    %v86 = vunpack.c.h.s8.bf16 %v64
    %v87 = vunpack.c.l.s8.bf16 %v65
    %v88 = vunpack.c.l.s8.bf16 %v66
    %v89 = vunpack.c.h.s8.bf16 %v65
    %v90 = vunpack.c.h.s8.bf16 %v66
    %v91 = vunpack.c.l.s8.bf16 %v67
    %v92 = vunpack.c.l.s8.bf16 %v68
    %v93 = vunpack.c.h.s8.bf16 %v67
    %v94 = vunpack.c.h.s8.bf16 %v68
    %v95 = vunpack.c.l.s8.bf16 %v69
    %v96 = vunpack.c.l.s8.bf16 %v70
    %v97 = vunpack.c.h.s8.bf16 %v69
    %v98 = vunpack.c.h.s8.bf16 %v70
    %v99 = vunpack.c.l.s8.bf16 %v71
    %v100 = vunpack.c.l.s8.bf16 %v72
    %v101 = vunpack.c.h.s8.bf16 %v71
    %v102 = vunpack.c.h.s8.bf16 %v72
    %v103 = vunpack.c.l.s8.bf16 %v73
    %v104 = vunpack.c.l.s8.bf16 %v74
    %v105 = vunpack.c.h.s8.bf16 %v73
    %v106 = vunpack.c.h.s8.bf16 %v74
    %v107 = vld [vmem:[#allocation2] sm:$0xff]
    %v108 = vld [vmem:[#allocation2 + $0x8] sm:$0xff]
    %v109 = vld [vmem:[#allocation2 + $0x10] sm:$0xff]
    %v110 = vld [vmem:[#allocation2 + $0x18] sm:$0xff]
    %v111 = vld [vmem:[#allocation2 + $0x20] sm:$0xff]
    %v112 = vld [vmem:[#allocation2 + $0x28] sm:$0xff]
    %v113 = vld [vmem:[#allocation2 + $0x30] sm:$0xff]
    %v114 = vld [vmem:[#allocation2 + $0x38] sm:$0xff]
    %v115 = vld [vmem:[#allocation2 + $0x40] sm:$0xff]
    %v116 = vld [vmem:[#allocation2 + $0x48] sm:$0xff]
    %v117 = vld [vmem:[#allocation2 + $0x50] sm:$0xff]
    %v118 = vld [vmem:[#allocation2 + $0x58] sm:$0xff]
    %v119 = vld [vmem:[#allocation2 + $0x60] sm:$0xff]
    %v120 = vld [vmem:[#allocation2 + $0x68] sm:$0xff]
    %v121 = vld [vmem:[#allocation2 + $0x70] sm:$0xff]
    %v122 = vld [vmem:[#allocation2 + $0x78] sm:$0xff]
    %v123 = vld [vmem:[#allocation2 + $0x80] sm:$0xff]
    %v124 = vld [vmem:[#allocation2 + $0x88] sm:$0xff]
    %v125 = vld [vmem:[#allocation2 + $0x90] sm:$0xff]
    %v126 = vld [vmem:[#allocation2 + $0x98] sm:$0xff]
    %v127 = vld [vmem:[#allocation2 + $0xa0] sm:$0xff]
    %v128 = vld [vmem:[#allocation2 + $0xa8] sm:$0xff]
    %v129 = vld [vmem:[#allocation2 + $0xb0] sm:$0xff]
    %v130 = vld [vmem:[#allocation2 + $0xb8] sm:$0xff]
    %v131 = vld [vmem:[#allocation2 + $0xc0] sm:$0xff]
    %v132 = vld [vmem:[#allocation2 + $0xc8] sm:$0xff]
    %v133 = vld [vmem:[#allocation2 + $0xd0] sm:$0xff]
    %v134 = vld [vmem:[#allocation2 + $0xd8] sm:$0xff]
    %v135 = vld [vmem:[#allocation2 + $0xe0] sm:$0xff]
    %v136 = vld [vmem:[#allocation2 + $0xe8] sm:$0xff]
    %v137 = vld [vmem:[#allocation2 + $0xf0] sm:$0xff]
    %v138 = vld [vmem:[#allocation2 + $0xf8] sm:$0xff]
    %v139 = vld [vmem:[%s2] sm:$0xf]
    %v140 = vld [vmem:[%s2 + $0x4] sm:$0xf]
    %v141 = vld [vmem:[%s2 + $0x8] sm:$0xf]
    %v142 = vld [vmem:[%s2 + $0xc] sm:$0xf]
    %v143 = vld [vmem:[%s2 + $0x10] sm:$0xf]
    %v144 = vld [vmem:[%s2 + $0x14] sm:$0xf]
    %v145 = vld [vmem:[%s2 + $0x18] sm:$0xf]
    %v146 = vld [vmem:[%s2 + $0x1c] sm:$0xf]
    %v147 = vld [vmem:[%s2 + $0x20] sm:$0xf]
    %v148 = vld [vmem:[%s2 + $0x24] sm:$0xf]
    %v149 = vld [vmem:[%s2 + $0x28] sm:$0xf]
    %v150 = vld [vmem:[%s2 + $0x2c] sm:$0xf]
    %v151 = vld [vmem:[%s2 + $0x30] sm:$0xf]
    %v152 = vld [vmem:[%s2 + $0x34] sm:$0xf]
    %v153 = vld [vmem:[%s2 + $0x38] sm:$0xf]
    %v154 = vld [vmem:[%s2 + $0x3c] sm:$0xf]
    %v155 = vld [vmem:[%s2 + $0x40] sm:$0xf]
    %v156 = vld [vmem:[%s2 + $0x44] sm:$0xf]
    %v157 = vld [vmem:[%s2 + $0x48] sm:$0xf]
    %v158 = vld [vmem:[%s2 + $0x4c] sm:$0xf]
    %v159 = vld [vmem:[%s2 + $0x50] sm:$0xf]
    %v160 = vld [vmem:[%s2 + $0x54] sm:$0xf]
    %v161 = vld [vmem:[%s2 + $0x58] sm:$0xf]
    %v162 = vld [vmem:[%s2 + $0x5c] sm:$0xf]
    %v163 = vld [vmem:[%s2 + $0x60] sm:$0xf]
    %v164 = vld [vmem:[%s2 + $0x64] sm:$0xf]
    %v165 = vld [vmem:[%s2 + $0x68] sm:$0xf]
    %v166 = vld [vmem:[%s2 + $0x6c] sm:$0xf]
    %v167 = vld [vmem:[%s2 + $0x70] sm:$0xf]
    %v168 = vld [vmem:[%s2 + $0x74] sm:$0xf]
    %v169 = vld [vmem:[%s2 + $0x78] sm:$0xf]
    %v170 = vld [vmem:[%s2 + $0x7c] sm:$0xf]
    %v203 = vunpack.c.l.b16 %v139
    %v204 = vunpack.c.l.b16 %v140
    %v205 = vunpack.c.l.b16 %v141
    %v206 = vunpack.c.l.b16 %v142
    %v207 = vunpack.c.l.b16 %v143
    %v208 = vunpack.c.l.b16 %v144
    %v209 = vunpack.c.l.b16 %v145
    %v210 = vunpack.c.l.b16 %v146
    %v211 = vunpack.c.l.b16 %v147
    %v212 = vunpack.c.l.b16 %v148
    %v213 = vunpack.c.l.b16 %v149
    %v214 = vunpack.c.l.b16 %v150
    %v215 = vunpack.c.l.b16 %v151
    %v216 = vunpack.c.l.b16 %v152
    %v217 = vunpack.c.l.b16 %v153
    %v218 = vunpack.c.l.b16 %v154
    %v219 = vunpack.c.l.b16 %v155
    %v220 = vunpack.c.l.b16 %v156
    %v221 = vunpack.c.l.b16 %v157
    %v222 = vunpack.c.l.b16 %v158
    %v223 = vunpack.c.l.b16 %v159
    %v224 = vunpack.c.l.b16 %v160
    %v225 = vunpack.c.l.b16 %v161
    %v226 = vunpack.c.l.b16 %v162
    %v227 = vunpack.c.l.b16 %v163
    %v228 = vunpack.c.l.b16 %v164
    %v229 = vunpack.c.l.b16 %v165
    %v230 = vunpack.c.l.b16 %v166
    %v231 = vunpack.c.l.b16 %v167
    %v232 = vunpack.c.l.b16 %v168
    %v233 = vunpack.c.l.b16 %v169
    %v234 = vunpack.c.l.b16 %v170
    %v235 = vpack.c.b16 %v204, %v203
    %v236 = vpack.c.b16 %v206, %v205
    %v237 = vpack.c.b16 %v208, %v207
    %v238 = vpack.c.b16 %v210, %v209
    %v239 = vpack.c.b16 %v212, %v211
    %v240 = vpack.c.b16 %v214, %v213
    %v241 = vpack.c.b16 %v216, %v215
    %v242 = vpack.c.b16 %v218, %v217
    %v243 = vpack.c.b16 %v220, %v219
    %v244 = vpack.c.b16 %v222, %v221
    %v245 = vpack.c.b16 %v224, %v223
    %v246 = vpack.c.b16 %v226, %v225
    %v247 = vpack.c.b16 %v228, %v227
    %v248 = vpack.c.b16 %v230, %v229
    %v249 = vpack.c.b16 %v232, %v231
    %v250 = vpack.c.b16 %v234, %v233
    %267 = vmatprep.subr.bf16.mxu0 0
    %268 = vmatpush1.bf16.msra.mxu0 %v235
    %269 = vmatprep.subr.bf16.mxu0 0
    %270 = vmatpush1.bf16.msra.mxu0 %v236
    %271 = vmatprep.subr.bf16.mxu0 0
    %272 = vmatpush1.bf16.msra.mxu0 %v237
    %273 = vmatprep.subr.bf16.mxu0 0
    %274 = vmatpush1.bf16.msra.mxu0 %v238
    %275 = vmatprep.subr.bf16.mxu0 0
    %276 = vmatpush1.bf16.msra.mxu0 %v239
    %277 = vmatprep.subr.bf16.mxu0 0
    %278 = vmatpush1.bf16.msra.mxu0 %v240
    %279 = vmatprep.subr.bf16.mxu0 0
    %280 = vmatpush1.bf16.msra.mxu0 %v241
    %281 = vmatprep.subr.bf16.mxu0 0
    %282 = vmatpush1.bf16.msra.mxu0 %v242
    %283 = vmatprep.subr.bf16.mxu0 0
    %284 = vmatpush1.bf16.msra.mxu0 %v243
    %285 = vmatprep.subr.bf16.mxu0 0
    %286 = vmatpush1.bf16.msra.mxu0 %v244
    %287 = vmatprep.subr.bf16.mxu0 0
    %288 = vmatpush1.bf16.msra.mxu0 %v245
    %289 = vmatprep.subr.bf16.mxu0 0
    %290 = vmatpush1.bf16.msra.mxu0 %v246
    %291 = vmatprep.subr.bf16.mxu0 0
    %292 = vmatpush1.bf16.msra.mxu0 %v247
    %293 = vmatprep.subr.bf16.mxu0 0
    %294 = vmatpush1.bf16.msra.mxu0 %v248
    %295 = vmatprep.subr.bf16.mxu0 0
    %296 = vmatpush1.bf16.msra.mxu0 %v249
    %297 = vmatprep.subr.bf16.mxu0 0
    %298 = vmatpush1.bf16.msra.mxu0 %v250
    %299 = vmatprep.mubr.bf16.mxu0 %v76
    %300 = vmatmul.mubr.bf16.gmra.mrb[0].mxu0 %v75
    %v301 = vpop.f32.mrb[0].mxu0
    %v302 = vadd.f32 0.0, %v301
    %v303 = vpop.f32.mrb[0].mxu0
    %v304 = vpop.f32.mrb[0].mxu0
    %v305 = vadd.f32 0.0, %v304
    %v306 = vpop.f32.mrb[0].mxu0
    %307 = vmatprep.mubr.bf16.mxu0 %v78
    %308 = vmatmul.mubr.bf16.gmra.mrb[0].mxu0 %v77
    %v309 = vpop.f32.mrb[0].mxu0
    %v310 = vadd.f32 0.0, %v309
    %v311 = vpop.f32.mrb[0].mxu0
    %v312 = vpop.f32.mrb[0].mxu0
    %v313 = vadd.f32 0.0, %v312
    %v314 = vpop.f32.mrb[0].mxu0
    %315 = vmatprep.mubr.bf16.mxu0 %v80
    %316 = vmatmul.mubr.bf16.gmra.mrb[0].mxu0 %v79
    %v317 = vpop.f32.mrb[0].mxu0
    %v318 = vadd.f32 0.0, %v317
    %v319 = vpop.f32.mrb[0].mxu0
    %v320 = vpop.f32.mrb[0].mxu0
    %v321 = vadd.f32 0.0, %v320
    %v322 = vpop.f32.mrb[0].mxu0
    %323 = vmatprep.mubr.bf16.mxu0 %v82
    %324 = vmatmul.mubr.bf16.gmra.mrb[0].mxu0 %v81
    %v325 = vpop.f32.mrb[0].mxu0
    %v326 = vadd.f32 0.0, %v325
    %v327 = vpop.f32.mrb[0].mxu0
    %v328 = vpop.f32.mrb[0].mxu0
    %v329 = vadd.f32 0.0, %v328
    %v330 = vpop.f32.mrb[0].mxu0
    %331 = vmatprep.mubr.bf16.mxu0 %v84
    %332 = vmatmul.mubr.bf16.gmra.mrb[0].mxu0 %v83
    %v333 = vpop.f32.mrb[0].mxu0
    %v334 = vadd.f32 0.0, %v333
    %v335 = vpop.f32.mrb[0].mxu0
    %v336 = vpop.f32.mrb[0].mxu0
    %v337 = vadd.f32 0.0, %v336
    %v338 = vpop.f32.mrb[0].mxu0
    %339 = vmatprep.mubr.bf16.mxu0 %v86
    %340 = vmatmul.mubr.bf16.gmra.mrb[0].mxu0 %v85
    %v341 = vpop.f32.mrb[0].mxu0
    %v342 = vadd.f32 0.0, %v341
    %v343 = vpop.f32.mrb[0].mxu0
    %v344 = vpop.f32.mrb[0].mxu0
    %v345 = vadd.f32 0.0, %v344
    %v346 = vpop.f32.mrb[0].mxu0
    %347 = vmatprep.mubr.bf16.mxu0 %v88
    %348 = vmatmul.mubr.bf16.gmra.mrb[0].mxu0 %v87
    %v349 = vpop.f32.mrb[0].mxu0
    %v350 = vadd.f32 0.0, %v349
    %v351 = vpop.f32.mrb[0].mxu0
    %v352 = vpop.f32.mrb[0].mxu0
    %v353 = vadd.f32 0.0, %v352
    %v354 = vpop.f32.mrb[0].mxu0
    %355 = vmatprep.mubr.bf16.mxu0 %v90
    %356 = vmatmul.mubr.bf16.gmra.mrb[0].mxu0 %v89
    %v357 = vpop.f32.mrb[0].mxu0
    %v358 = vadd.f32 0.0, %v357
    %v359 = vpop.f32.mrb[0].mxu0
    %v360 = vpop.f32.mrb[0].mxu0
    %v361 = vadd.f32 0.0, %v360
    %v362 = vpop.f32.mrb[0].mxu0
    %363 = vmatprep.mubr.bf16.mxu0 %v92
    %364 = vmatmul.mubr.bf16.gmra.mrb[0].mxu0 %v91
    %v365 = vpop.f32.mrb[0].mxu0
    %v366 = vadd.f32 0.0, %v365
    %v367 = vpop.f32.mrb[0].mxu0
    %v368 = vpop.f32.mrb[0].mxu0
    %v369 = vadd.f32 0.0, %v368
    %v370 = vpop.f32.mrb[0].mxu0
    %371 = vmatprep.mubr.bf16.mxu0 %v94
    %372 = vmatmul.mubr.bf16.gmra.mrb[0].mxu0 %v93
    %v373 = vpop.f32.mrb[0].mxu0
    %v374 = vadd.f32 0.0, %v373
    %v375 = vpop.f32.mrb[0].mxu0
    %v376 = vpop.f32.mrb[0].mxu0
    %v377 = vadd.f32 0.0, %v376
    %v378 = vpop.f32.mrb[0].mxu0
    %379 = vmatprep.mubr.bf16.mxu0 %v96
    %380 = vmatmul.mubr.bf16.gmra.mrb[0].mxu0 %v95
    %v381 = vpop.f32.mrb[0].mxu0
    %v382 = vadd.f32 0.0, %v381
    %v383 = vpop.f32.mrb[0].mxu0
    %v384 = vpop.f32.mrb[0].mxu0
    %v385 = vadd.f32 0.0, %v384
    %v386 = vpop.f32.mrb[0].mxu0
    %387 = vmatprep.mubr.bf16.mxu0 %v98
    %388 = vmatmul.mubr.bf16.gmra.mrb[0].mxu0 %v97
    %v389 = vpop.f32.mrb[0].mxu0
    %v390 = vadd.f32 0.0, %v389
    %v391 = vpop.f32.mrb[0].mxu0
    %v392 = vpop.f32.mrb[0].mxu0
    %v393 = vadd.f32 0.0, %v392
    %v394 = vpop.f32.mrb[0].mxu0
    %395 = vmatprep.mubr.bf16.mxu0 %v100
    %396 = vmatmul.mubr.bf16.gmra.mrb[0].mxu0 %v99
    %v397 = vpop.f32.mrb[0].mxu0
    %v398 = vadd.f32 0.0, %v397
    %v399 = vpop.f32.mrb[0].mxu0
    %v400 = vpop.f32.mrb[0].mxu0
    %v401 = vadd.f32 0.0, %v400
    %v402 = vpop.f32.mrb[0].mxu0
    %403 = vmatprep.mubr.bf16.mxu0 %v102
    %404 = vmatmul.mubr.bf16.gmra.mrb[0].mxu0 %v101
    %v405 = vpop.f32.mrb[0].mxu0
    %v406 = vadd.f32 0.0, %v405
    %v407 = vpop.f32.mrb[0].mxu0
    %v408 = vpop.f32.mrb[0].mxu0
    %v409 = vadd.f32 0.0, %v408
    %v410 = vpop.f32.mrb[0].mxu0
    %411 = vmatprep.mubr.bf16.mxu0 %v104
    %412 = vmatmul.mubr.bf16.gmra.mrb[0].mxu0 %v103
    %v413 = vpop.f32.mrb[0].mxu0
    %v414 = vadd.f32 0.0, %v413
    %v415 = vpop.f32.mrb[0].mxu0
    %v416 = vpop.f32.mrb[0].mxu0
    %v417 = vadd.f32 0.0, %v416
    %v418 = vpop.f32.mrb[0].mxu0
    %419 = vmatprep.mubr.bf16.mxu0 %v106
    %420 = vmatmul.mubr.bf16.gmra.mrb[0].mxu0 %v105
    %v421 = vpop.f32.mrb[0].mxu0
    %v422 = vadd.f32 0.0, %v421
    %v423 = vpop.f32.mrb[0].mxu0
    %v424 = vpop.f32.mrb[0].mxu0
    %v425 = vadd.f32 0.0, %v424
    %v426 = vpop.f32.mrb[0].mxu0
    %427 = vdwg.mxu0
    %v428 = vadd.f32 %v107, %v302
    %v429 = vadd.f32 %v108, %v305
    %v430 = vadd.f32 %v109, %v310
    %v431 = vadd.f32 %v110, %v313
    %v432 = vadd.f32 %v111, %v318
    %v433 = vadd.f32 %v112, %v321
    %v434 = vadd.f32 %v113, %v326
    %v435 = vadd.f32 %v114, %v329
    %v436 = vadd.f32 %v115, %v334
    %v437 = vadd.f32 %v116, %v337
    %v438 = vadd.f32 %v117, %v342
    %v439 = vadd.f32 %v118, %v345
    %v440 = vadd.f32 %v119, %v350
    %v441 = vadd.f32 %v120, %v353
    %v442 = vadd.f32 %v121, %v358
    %v443 = vadd.f32 %v122, %v361
    %v444 = vadd.f32 %v123, %v366
    %v445 = vadd.f32 %v124, %v369
    %v446 = vadd.f32 %v125, %v374
    %v447 = vadd.f32 %v126, %v377
    %v448 = vadd.f32 %v127, %v382
    %v449 = vadd.f32 %v128, %v385
    %v450 = vadd.f32 %v129, %v390
    %v451 = vadd.f32 %v130, %v393
    %v452 = vadd.f32 %v131, %v398
    %v453 = vadd.f32 %v132, %v401
    %v454 = vadd.f32 %v133, %v406
    %v455 = vadd.f32 %v134, %v409
    %v456 = vadd.f32 %v135, %v414
    %v457 = vadd.f32 %v136, %v417
    %v458 = vadd.f32 %v137, %v422
    %v459 = vadd.f32 %v138, %v425
    %460 = vst [vmem:[#allocation2] sm:$0xff] %v428
    %461 = vst [vmem:[#allocation2 + $0x8] sm:$0xff] %v429
    %462 = vst [vmem:[#allocation2 + $0x10] sm:$0xff] %v430
    %463 = vst [vmem:[#allocation2 + $0x18] sm:$0xff] %v431
    %464 = vst [vmem:[#allocation2 + $0x20] sm:$0xff] %v432
    %465 = vst [vmem:[#allocation2 + $0x28] sm:$0xff] %v433
    %466 = vst [vmem:[#allocation2 + $0x30] sm:$0xff] %v434
    %467 = vst [vmem:[#allocation2 + $0x38] sm:$0xff] %v435
    %468 = vst [vmem:[#allocation2 + $0x40] sm:$0xff] %v436
    %469 = vst [vmem:[#allocation2 + $0x48] sm:$0xff] %v437
    %470 = vst [vmem:[#allocation2 + $0x50] sm:$0xff] %v438
    %471 = vst [vmem:[#allocation2 + $0x58] sm:$0xff] %v439
    %472 = vst [vmem:[#allocation2 + $0x60] sm:$0xff] %v440
    %473 = vst [vmem:[#allocation2 + $0x68] sm:$0xff] %v441
    %474 = vst [vmem:[#allocation2 + $0x70] sm:$0xff] %v442
    %475 = vst [vmem:[#allocation2 + $0x78] sm:$0xff] %v443
    %476 = vst [vmem:[#allocation2 + $0x80] sm:$0xff] %v444
    %477 = vst [vmem:[#allocation2 + $0x88] sm:$0xff] %v445
    %478 = vst [vmem:[#allocation2 + $0x90] sm:$0xff] %v446
    %479 = vst [vmem:[#allocation2 + $0x98] sm:$0xff] %v447
    %480 = vst [vmem:[#allocation2 + $0xa0] sm:$0xff] %v448
    %481 = vst [vmem:[#allocation2 + $0xa8] sm:$0xff] %v449
    %482 = vst [vmem:[#allocation2 + $0xb0] sm:$0xff] %v450
    %483 = vst [vmem:[#allocation2 + $0xb8] sm:$0xff] %v451
    %484 = vst [vmem:[#allocation2 + $0xc0] sm:$0xff] %v452
    %485 = vst [vmem:[#allocation2 + $0xc8] sm:$0xff] %v453
    %486 = vst [vmem:[#allocation2 + $0xd0] sm:$0xff] %v454
    %487 = vst [vmem:[#allocation2 + $0xd8] sm:$0xff] %v455
    %488 = vst [vmem:[#allocation2 + $0xe0] sm:$0xff] %v456
    %489 = vst [vmem:[#allocation2 + $0xe8] sm:$0xff] %v457
    %490 = vst [vmem:[#allocation2 + $0xf0] sm:$0xff] %v458
    %491 = vst [vmem:[#allocation2 + $0xf8] sm:$0xff] %v459
    // Predicated region
    $region22: #{lightgcn_forward.5} parent=1 // pred_check
      %p492 = pneg %p23
    $region23: #{lightgcn_forward.5} parent=1 // pred_check_branch
      %494 = sbr.rel (%p492) target = $region25
    $region24: #{lightgcn_forward.5} parent=1 // pred_region
      %v495 = vld [vmem:[#allocation2] sm:$0xff]
      %v496 = vld [vmem:[#allocation2 + $0x8] sm:$0xff]
      %v497 = vld [vmem:[#allocation2 + $0x10] sm:$0xff]
      %v498 = vld [vmem:[#allocation2 + $0x18] sm:$0xff]
      %v499 = vld [vmem:[#allocation2 + $0x20] sm:$0xff]
      %v500 = vld [vmem:[#allocation2 + $0x28] sm:$0xff]
      %v501 = vld [vmem:[#allocation2 + $0x30] sm:$0xff]
      %v502 = vld [vmem:[#allocation2 + $0x38] sm:$0xff]
      %v503 = vld [vmem:[#allocation2 + $0x40] sm:$0xff]
      %v504 = vld [vmem:[#allocation2 + $0x48] sm:$0xff]
      %v505 = vld [vmem:[#allocation2 + $0x50] sm:$0xff]
      %v506 = vld [vmem:[#allocation2 + $0x58] sm:$0xff]
      %v507 = vld [vmem:[#allocation2 + $0x60] sm:$0xff]
      %v508 = vld [vmem:[#allocation2 + $0x68] sm:$0xff]
      %v509 = vld [vmem:[#allocation2 + $0x70] sm:$0xff]
      %v510 = vld [vmem:[#allocation2 + $0x78] sm:$0xff]
      %v511 = vld [vmem:[#allocation2 + $0x80] sm:$0xff]
      %v512 = vld [vmem:[#allocation2 + $0x88] sm:$0xff]
      %v513 = vld [vmem:[#allocation2 + $0x90] sm:$0xff]
      %v514 = vld [vmem:[#allocation2 + $0x98] sm:$0xff]
      %v515 = vld [vmem:[#allocation2 + $0xa0] sm:$0xff]
      %v516 = vld [vmem:[#allocation2 + $0xa8] sm:$0xff]
      %v517 = vld [vmem:[#allocation2 + $0xb0] sm:$0xff]
      %v518 = vld [vmem:[#allocation2 + $0xb8] sm:$0xff]
      %v519 = vld [vmem:[#allocation2 + $0xc0] sm:$0xff]
      %v520 = vld [vmem:[#allocation2 + $0xc8] sm:$0xff]
      %v521 = vld [vmem:[#allocation2 + $0xd0] sm:$0xff]
      %v522 = vld [vmem:[#allocation2 + $0xd8] sm:$0xff]
      %v523 = vld [vmem:[#allocation2 + $0xe0] sm:$0xff]
      %v524 = vld [vmem:[#allocation2 + $0xe8] sm:$0xff]
      %v525 = vld [vmem:[#allocation2 + $0xf0] sm:$0xff]
      %v526 = vld [vmem:[#allocation2 + $0xf8] sm:$0xff]
      %v527 = vld [vmem:[%s1] sm:$0xff]
      %v528 = vld [vmem:[%s1 + $0x8] sm:$0xff]
      %v529 = vld [vmem:[%s1 + $0x10] sm:$0xff]
      %v530 = vld [vmem:[%s1 + $0x18] sm:$0xff]
      %v531 = vld [vmem:[%s1 + $0x20] sm:$0xff]
      %v532 = vld [vmem:[%s1 + $0x28] sm:$0xff]
      %v533 = vld [vmem:[%s1 + $0x30] sm:$0xff]
      %v534 = vld [vmem:[%s1 + $0x38] sm:$0xff]
      %v535 = vld [vmem:[%s1 + $0x40] sm:$0xff]
      %v536 = vld [vmem:[%s1 + $0x48] sm:$0xff]
      %v537 = vld [vmem:[%s1 + $0x50] sm:$0xff]
      %v538 = vld [vmem:[%s1 + $0x58] sm:$0xff]
      %v539 = vld [vmem:[%s1 + $0x60] sm:$0xff]
      %v540 = vld [vmem:[%s1 + $0x68] sm:$0xff]
      %v541 = vld [vmem:[%s1 + $0x70] sm:$0xff]
      %v542 = vld [vmem:[%s1 + $0x78] sm:$0xff]
      %v543 = vld [vmem:[%s1 + $0x80] sm:$0xff]
      %v544 = vld [vmem:[%s1 + $0x88] sm:$0xff]
      %v545 = vld [vmem:[%s1 + $0x90] sm:$0xff]
      %v546 = vld [vmem:[%s1 + $0x98] sm:$0xff]
      %v547 = vld [vmem:[%s1 + $0xa0] sm:$0xff]
      %v548 = vld [vmem:[%s1 + $0xa8] sm:$0xff]
      %v549 = vld [vmem:[%s1 + $0xb0] sm:$0xff]
      %v550 = vld [vmem:[%s1 + $0xb8] sm:$0xff]
      %v551 = vld [vmem:[%s1 + $0xc0] sm:$0xff]
      %v552 = vld [vmem:[%s1 + $0xc8] sm:$0xff]
      %v553 = vld [vmem:[%s1 + $0xd0] sm:$0xff]
      %v554 = vld [vmem:[%s1 + $0xd8] sm:$0xff]
      %v555 = vld [vmem:[%s1 + $0xe0] sm:$0xff]
      %v556 = vld [vmem:[%s1 + $0xe8] sm:$0xff]
      %v557 = vld [vmem:[%s1 + $0xf0] sm:$0xff]
      %v558 = vld [vmem:[%s1 + $0xf8] sm:$0xff]
      %560 = vset.pattern.permute.xlu0 0
      %561 = vperm.xlu0 %560, %v527
      %v562 = vpop.permute.xlu0 %561
      %565 = vset.pattern.permute.xlu0 0
      %566 = vperm.xlu0 %565, %v528
      %v567 = vpop.permute.xlu0 %566
      %570 = vset.pattern.permute.xlu0 0
      %571 = vperm.xlu0 %570, %v529
      %v572 = vpop.permute.xlu0 %571
      %575 = vset.pattern.permute.xlu0 0
      %576 = vperm.xlu0 %575, %v530
      %v577 = vpop.permute.xlu0 %576
      %580 = vset.pattern.permute.xlu0 0
      %581 = vperm.xlu0 %580, %v531
      %v582 = vpop.permute.xlu0 %581
      %585 = vset.pattern.permute.xlu0 0
      %586 = vperm.xlu0 %585, %v532
      %v587 = vpop.permute.xlu0 %586
      %590 = vset.pattern.permute.xlu0 0
      %591 = vperm.xlu0 %590, %v533
      %v592 = vpop.permute.xlu0 %591
      %595 = vset.pattern.permute.xlu0 0
      %596 = vperm.xlu0 %595, %v534
      %v597 = vpop.permute.xlu0 %596
      %600 = vset.pattern.permute.xlu0 0
      %601 = vperm.xlu0 %600, %v535
      %v602 = vpop.permute.xlu0 %601
      %605 = vset.pattern.permute.xlu0 0
      %606 = vperm.xlu0 %605, %v536
      %v607 = vpop.permute.xlu0 %606
      %610 = vset.pattern.permute.xlu0 0
      %611 = vperm.xlu0 %610, %v537
      %v612 = vpop.permute.xlu0 %611
      %615 = vset.pattern.permute.xlu0 0
      %616 = vperm.xlu0 %615, %v538
      %v617 = vpop.permute.xlu0 %616
      %620 = vset.pattern.permute.xlu0 0
      %621 = vperm.xlu0 %620, %v539
      %v622 = vpop.permute.xlu0 %621
      %625 = vset.pattern.permute.xlu0 0
      %626 = vperm.xlu0 %625, %v540
      %v627 = vpop.permute.xlu0 %626
      %630 = vset.pattern.permute.xlu0 0
      %631 = vperm.xlu0 %630, %v541
      %v632 = vpop.permute.xlu0 %631
      %635 = vset.pattern.permute.xlu0 0
      %636 = vperm.xlu0 %635, %v542
      %v637 = vpop.permute.xlu0 %636
      %640 = vset.pattern.permute.xlu0 0
      %641 = vperm.xlu0 %640, %v543
      %v642 = vpop.permute.xlu0 %641
      %645 = vset.pattern.permute.xlu0 0
      %646 = vperm.xlu0 %645, %v544
      %v647 = vpop.permute.xlu0 %646
      %650 = vset.pattern.permute.xlu0 0
      %651 = vperm.xlu0 %650, %v545
      %v652 = vpop.permute.xlu0 %651
      %655 = vset.pattern.permute.xlu0 0
      %656 = vperm.xlu0 %655, %v546
      %v657 = vpop.permute.xlu0 %656
      %660 = vset.pattern.permute.xlu0 0
      %661 = vperm.xlu0 %660, %v547
      %v662 = vpop.permute.xlu0 %661
      %665 = vset.pattern.permute.xlu0 0
      %666 = vperm.xlu0 %665, %v548
      %v667 = vpop.permute.xlu0 %666
      %670 = vset.pattern.permute.xlu0 0
      %671 = vperm.xlu0 %670, %v549
      %v672 = vpop.permute.xlu0 %671
      %675 = vset.pattern.permute.xlu0 0
      %676 = vperm.xlu0 %675, %v550
      %v677 = vpop.permute.xlu0 %676
      %680 = vset.pattern.permute.xlu0 0
      %681 = vperm.xlu0 %680, %v551
      %v682 = vpop.permute.xlu0 %681
      %685 = vset.pattern.permute.xlu0 0
      %686 = vperm.xlu0 %685, %v552
      %v687 = vpop.permute.xlu0 %686
      %690 = vset.pattern.permute.xlu0 0
      %691 = vperm.xlu0 %690, %v553
      %v692 = vpop.permute.xlu0 %691
      %695 = vset.pattern.permute.xlu0 0
      %696 = vperm.xlu0 %695, %v554
      %v697 = vpop.permute.xlu0 %696
      %700 = vset.pattern.permute.xlu0 0
      %701 = vperm.xlu0 %700, %v555
      %v702 = vpop.permute.xlu0 %701
      %705 = vset.pattern.permute.xlu0 0
      %706 = vperm.xlu0 %705, %v556
      %v707 = vpop.permute.xlu0 %706
      %710 = vset.pattern.permute.xlu0 0
      %711 = vperm.xlu0 %710, %v557
      %v712 = vpop.permute.xlu0 %711
      %715 = vset.pattern.permute.xlu0 0
      %716 = vperm.xlu0 %715, %v558
      %v717 = vpop.permute.xlu0 %716
      %v719 = vmul.f32 %v495, %v562
      %v720 = vmul.f32 %v496, %v567
      %v721 = vmul.f32 %v497, %v572
      %v722 = vmul.f32 %v498, %v577
      %v723 = vmul.f32 %v499, %v582
      %v724 = vmul.f32 %v500, %v587
      %v725 = vmul.f32 %v501, %v592
      %v726 = vmul.f32 %v502, %v597
      %v727 = vmul.f32 %v503, %v602
      %v728 = vmul.f32 %v504, %v607
      %v729 = vmul.f32 %v505, %v612
      %v730 = vmul.f32 %v506, %v617
      %v731 = vmul.f32 %v507, %v622
      %v732 = vmul.f32 %v508, %v627
      %v733 = vmul.f32 %v509, %v632
      %v734 = vmul.f32 %v510, %v637
      %v735 = vmul.f32 %v511, %v642
      %v736 = vmul.f32 %v512, %v647
      %v737 = vmul.f32 %v513, %v652
      %v738 = vmul.f32 %v514, %v657
      %v739 = vmul.f32 %v515, %v662
      %v740 = vmul.f32 %v516, %v667
      %v741 = vmul.f32 %v517, %v672
      %v742 = vmul.f32 %v518, %v677
      %v743 = vmul.f32 %v519, %v682
      %v744 = vmul.f32 %v520, %v687
      %v745 = vmul.f32 %v521, %v692
      %v746 = vmul.f32 %v522, %v697
      %v747 = vmul.f32 %v523, %v702
      %v748 = vmul.f32 %v524, %v707
      %v749 = vmul.f32 %v525, %v712
      %v750 = vmul.f32 %v526, %v717
      %751 = vst [vmem:[#allocation2] sm:$0xff] %v719
      %752 = vst [vmem:[#allocation2 + $0x8] sm:$0xff] %v720
      %753 = vst [vmem:[#allocation2 + $0x10] sm:$0xff] %v721
      %754 = vst [vmem:[#allocation2 + $0x18] sm:$0xff] %v722
      %755 = vst [vmem:[#allocation2 + $0x20] sm:$0xff] %v723
      %756 = vst [vmem:[#allocation2 + $0x28] sm:$0xff] %v724
      %757 = vst [vmem:[#allocation2 + $0x30] sm:$0xff] %v725
      %758 = vst [vmem:[#allocation2 + $0x38] sm:$0xff] %v726
      %759 = vst [vmem:[#allocation2 + $0x40] sm:$0xff] %v727
      %760 = vst [vmem:[#allocation2 + $0x48] sm:$0xff] %v728
      %761 = vst [vmem:[#allocation2 + $0x50] sm:$0xff] %v729
      %762 = vst [vmem:[#allocation2 + $0x58] sm:$0xff] %v730
      %763 = vst [vmem:[#allocation2 + $0x60] sm:$0xff] %v731
      %764 = vst [vmem:[#allocation2 + $0x68] sm:$0xff] %v732
      %765 = vst [vmem:[#allocation2 + $0x70] sm:$0xff] %v733
      %766 = vst [vmem:[#allocation2 + $0x78] sm:$0xff] %v734
      %767 = vst [vmem:[#allocation2 + $0x80] sm:$0xff] %v735
      %768 = vst [vmem:[#allocation2 + $0x88] sm:$0xff] %v736
      %769 = vst [vmem:[#allocation2 + $0x90] sm:$0xff] %v737
      %770 = vst [vmem:[#allocation2 + $0x98] sm:$0xff] %v738
      %771 = vst [vmem:[#allocation2 + $0xa0] sm:$0xff] %v739
      %772 = vst [vmem:[#allocation2 + $0xa8] sm:$0xff] %v740
      %773 = vst [vmem:[#allocation2 + $0xb0] sm:$0xff] %v741
      %774 = vst [vmem:[#allocation2 + $0xb8] sm:$0xff] %v742
      %775 = vst [vmem:[#allocation2 + $0xc0] sm:$0xff] %v743
      %776 = vst [vmem:[#allocation2 + $0xc8] sm:$0xff] %v744
      %777 = vst [vmem:[#allocation2 + $0xd0] sm:$0xff] %v745
      %778 = vst [vmem:[#allocation2 + $0xd8] sm:$0xff] %v746
      %779 = vst [vmem:[#allocation2 + $0xe0] sm:$0xff] %v747
      %780 = vst [vmem:[#allocation2 + $0xe8] sm:$0xff] %v748
      %781 = vst [vmem:[#allocation2 + $0xf0] sm:$0xff] %v749
      %782 = vst [vmem:[#allocation2 + $0xf8] sm:$0xff] %v750
      %v783 = vpack.c.bf16 %v720, %v719
      %v784 = vpack.c.bf16 %v722, %v721
      %v785 = vpack.c.bf16 %v724, %v723
      %v786 = vpack.c.bf16 %v726, %v725
      %v787 = vpack.c.bf16 %v728, %v727
      %v788 = vpack.c.bf16 %v730, %v729
      %v789 = vpack.c.bf16 %v732, %v731
      %v790 = vpack.c.bf16 %v734, %v733
      %v791 = vpack.c.bf16 %v736, %v735
      %v792 = vpack.c.bf16 %v738, %v737
      %v793 = vpack.c.bf16 %v740, %v739
      %v794 = vpack.c.bf16 %v742, %v741
      %v795 = vpack.c.bf16 %v744, %v743
      %v796 = vpack.c.bf16 %v746, %v745
      %v797 = vpack.c.bf16 %v748, %v747
      %v798 = vpack.c.bf16 %v750, %v749
      %v815 = vunpack.c.l.b16 %v783
      %v816 = vunpack.c.h.b16 %v783
      %v817 = vunpack.c.l.b16 %v784
      %v818 = vunpack.c.h.b16 %v784
      %v819 = vunpack.c.l.b16 %v785
      %v820 = vunpack.c.h.b16 %v785
      %v821 = vunpack.c.l.b16 %v786
      %v822 = vunpack.c.h.b16 %v786
      %v823 = vunpack.c.l.b16 %v787
      %v824 = vunpack.c.h.b16 %v787
      %v825 = vunpack.c.l.b16 %v788
      %v826 = vunpack.c.h.b16 %v788
      %v827 = vunpack.c.l.b16 %v789
      %v828 = vunpack.c.h.b16 %v789
      %v829 = vunpack.c.l.b16 %v790
      %v830 = vunpack.c.h.b16 %v790
      %v831 = vunpack.c.l.b16 %v791
      %v832 = vunpack.c.h.b16 %v791
      %v833 = vunpack.c.l.b16 %v792
      %v834 = vunpack.c.h.b16 %v792
      %v835 = vunpack.c.l.b16 %v793
      %v836 = vunpack.c.h.b16 %v793
      %v837 = vunpack.c.l.b16 %v794
      %v838 = vunpack.c.h.b16 %v794
      %v839 = vunpack.c.l.b16 %v795
      %v840 = vunpack.c.h.b16 %v795
      %v841 = vunpack.c.l.b16 %v796
      %v842 = vunpack.c.h.b16 %v796
      %v843 = vunpack.c.l.b16 %v797
      %v844 = vunpack.c.h.b16 %v797
      %v845 = vunpack.c.l.b16 %v798
      %v846 = vunpack.c.h.b16 %v798
      %v847 = vpack.c.b16 %v815, %v815
      %v848 = vpack.c.b16 %v816, %v816
      %v849 = vpack.c.b16 %v817, %v817
      %v850 = vpack.c.b16 %v818, %v818
      %v851 = vpack.c.b16 %v819, %v819
      %v852 = vpack.c.b16 %v820, %v820
      %v853 = vpack.c.b16 %v821, %v821
      %v854 = vpack.c.b16 %v822, %v822
      %v855 = vpack.c.b16 %v823, %v823
      %v856 = vpack.c.b16 %v824, %v824
      %v857 = vpack.c.b16 %v825, %v825
      %v858 = vpack.c.b16 %v826, %v826
      %v859 = vpack.c.b16 %v827, %v827
      %v860 = vpack.c.b16 %v828, %v828
      %v861 = vpack.c.b16 %v829, %v829
      %v862 = vpack.c.b16 %v830, %v830
      %v863 = vpack.c.b16 %v831, %v831
      %v864 = vpack.c.b16 %v832, %v832
      %v865 = vpack.c.b16 %v833, %v833
      %v866 = vpack.c.b16 %v834, %v834
      %v867 = vpack.c.b16 %v835, %v835
      %v868 = vpack.c.b16 %v836, %v836
      %v869 = vpack.c.b16 %v837, %v837
      %v870 = vpack.c.b16 %v838, %v838
      %v871 = vpack.c.b16 %v839, %v839
      %v872 = vpack.c.b16 %v840, %v840
      %v873 = vpack.c.b16 %v841, %v841
      %v874 = vpack.c.b16 %v842, %v842
      %v875 = vpack.c.b16 %v843, %v843
      %v876 = vpack.c.b16 %v844, %v844
      %v877 = vpack.c.b16 %v845, %v845
      %v878 = vpack.c.b16 %v846, %v846
      %911 = vst [vmem:[#allocation4] sm:$0xf] %v847
      %912 = vst [vmem:[#allocation4 + $0x4] sm:$0xf] %v848
      %913 = vst [vmem:[#allocation4 + $0x8] sm:$0xf] %v849
      %914 = vst [vmem:[#allocation4 + $0xc] sm:$0xf] %v850
      %915 = vst [vmem:[#allocation4 + $0x10] sm:$0xf] %v851
      %916 = vst [vmem:[#allocation4 + $0x14] sm:$0xf] %v852
      %917 = vst [vmem:[#allocation4 + $0x18] sm:$0xf] %v853
      %918 = vst [vmem:[#allocation4 + $0x1c] sm:$0xf] %v854
      %919 = vst [vmem:[#allocation4 + $0x20] sm:$0xf] %v855
      %920 = vst [vmem:[#allocation4 + $0x24] sm:$0xf] %v856
      %921 = vst [vmem:[#allocation4 + $0x28] sm:$0xf] %v857
      %922 = vst [vmem:[#allocation4 + $0x2c] sm:$0xf] %v858
      %923 = vst [vmem:[#allocation4 + $0x30] sm:$0xf] %v859
      %924 = vst [vmem:[#allocation4 + $0x34] sm:$0xf] %v860
      %925 = vst [vmem:[#allocation4 + $0x38] sm:$0xf] %v861
      %926 = vst [vmem:[#allocation4 + $0x3c] sm:$0xf] %v862
      %927 = vst [vmem:[#allocation4 + $0x40] sm:$0xf] %v863
      %928 = vst [vmem:[#allocation4 + $0x44] sm:$0xf] %v864
      %929 = vst [vmem:[#allocation4 + $0x48] sm:$0xf] %v865
      %930 = vst [vmem:[#allocation4 + $0x4c] sm:$0xf] %v866
      %931 = vst [vmem:[#allocation4 + $0x50] sm:$0xf] %v867
      %932 = vst [vmem:[#allocation4 + $0x54] sm:$0xf] %v868
      %933 = vst [vmem:[#allocation4 + $0x58] sm:$0xf] %v869
      %934 = vst [vmem:[#allocation4 + $0x5c] sm:$0xf] %v870
      %935 = vst [vmem:[#allocation4 + $0x60] sm:$0xf] %v871
      %936 = vst [vmem:[#allocation4 + $0x64] sm:$0xf] %v872
      %937 = vst [vmem:[#allocation4 + $0x68] sm:$0xf] %v873
      %938 = vst [vmem:[#allocation4 + $0x6c] sm:$0xf] %v874
      %939 = vst [vmem:[#allocation4 + $0x70] sm:$0xf] %v875
      %940 = vst [vmem:[#allocation4 + $0x74] sm:$0xf] %v876
      %941 = vst [vmem:[#allocation4 + $0x78] sm:$0xf] %v877
      %942 = vst [vmem:[#allocation4 + $0x7c] sm:$0xf] %v878
      %v943 = vld [vmem:[%s3] sm:$0xff]
      %v944 = vld [vmem:[%s3 + $0x8] sm:$0xff]
      %v945 = vld [vmem:[%s3 + $0x10] sm:$0xff]
      %v946 = vld [vmem:[%s3 + $0x18] sm:$0xff]
      %v947 = vld [vmem:[%s3 + $0x20] sm:$0xff]
      %v948 = vld [vmem:[%s3 + $0x28] sm:$0xff]
      %v949 = vld [vmem:[%s3 + $0x30] sm:$0xff]
      %v950 = vld [vmem:[%s3 + $0x38] sm:$0xff]
      %v951 = vld [vmem:[%s3 + $0x40] sm:$0xff]
      %v952 = vld [vmem:[%s3 + $0x48] sm:$0xff]
      %v953 = vld [vmem:[%s3 + $0x50] sm:$0xff]
      %v954 = vld [vmem:[%s3 + $0x58] sm:$0xff]
      %v955 = vld [vmem:[%s3 + $0x60] sm:$0xff]
      %v956 = vld [vmem:[%s3 + $0x68] sm:$0xff]
      %v957 = vld [vmem:[%s3 + $0x70] sm:$0xff]
      %v958 = vld [vmem:[%s3 + $0x78] sm:$0xff]
      %v959 = vld [vmem:[%s3 + $0x80] sm:$0xff]
      %v960 = vld [vmem:[%s3 + $0x88] sm:$0xff]
      %v961 = vld [vmem:[%s3 + $0x90] sm:$0xff]
      %v962 = vld [vmem:[%s3 + $0x98] sm:$0xff]
      %v963 = vld [vmem:[%s3 + $0xa0] sm:$0xff]
      %v964 = vld [vmem:[%s3 + $0xa8] sm:$0xff]
      %v965 = vld [vmem:[%s3 + $0xb0] sm:$0xff]
      %v966 = vld [vmem:[%s3 + $0xb8] sm:$0xff]
      %v967 = vld [vmem:[%s3 + $0xc0] sm:$0xff]
      %v968 = vld [vmem:[%s3 + $0xc8] sm:$0xff]
      %v969 = vld [vmem:[%s3 + $0xd0] sm:$0xff]
      %v970 = vld [vmem:[%s3 + $0xd8] sm:$0xff]
      %v971 = vld [vmem:[%s3 + $0xe0] sm:$0xff]
      %v972 = vld [vmem:[%s3 + $0xe8] sm:$0xff]
      %v973 = vld [vmem:[%s3 + $0xf0] sm:$0xff]
      %v974 = vld [vmem:[%s3 + $0xf8] sm:$0xff]
      %v975 = vadd.f32 %v943, %v719
      %v976 = vadd.f32 %v944, %v720
      %v977 = vadd.f32 %v945, %v721
      %v978 = vadd.f32 %v946, %v722
      %v979 = vadd.f32 %v947, %v723
      %v980 = vadd.f32 %v948, %v724
      %v981 = vadd.f32 %v949, %v725
      %v982 = vadd.f32 %v950, %v726
      %v983 = vadd.f32 %v951, %v727
      %v984 = vadd.f32 %v952, %v728
      %v985 = vadd.f32 %v953, %v729
      %v986 = vadd.f32 %v954, %v730
      %v987 = vadd.f32 %v955, %v731
      %v988 = vadd.f32 %v956, %v732
      %v989 = vadd.f32 %v957, %v733
      %v990 = vadd.f32 %v958, %v734
      %v991 = vadd.f32 %v959, %v735
      %v992 = vadd.f32 %v960, %v736
      %v993 = vadd.f32 %v961, %v737
      %v994 = vadd.f32 %v962, %v738
      %v995 = vadd.f32 %v963, %v739
      %v996 = vadd.f32 %v964, %v740
      %v997 = vadd.f32 %v965, %v741
      %v998 = vadd.f32 %v966, %v742
      %v999 = vadd.f32 %v967, %v743
      %v1000 = vadd.f32 %v968, %v744
      %v1001 = vadd.f32 %v969, %v745
      %v1002 = vadd.f32 %v970, %v746
      %v1003 = vadd.f32 %v971, %v747
      %v1004 = vadd.f32 %v972, %v748
      %v1005 = vadd.f32 %v973, %v749
      %v1006 = vadd.f32 %v974, %v750
      %1007 = vst [vmem:[%s6] sm:$0xff] %v975
      %1008 = vst [vmem:[%s6 + $0x8] sm:$0xff] %v976
      %1009 = vst [vmem:[%s6 + $0x10] sm:$0xff] %v977
      %1010 = vst [vmem:[%s6 + $0x18] sm:$0xff] %v978
      %1011 = vst [vmem:[%s6 + $0x20] sm:$0xff] %v979
      %1012 = vst [vmem:[%s6 + $0x28] sm:$0xff] %v980
      %1013 = vst [vmem:[%s6 + $0x30] sm:$0xff] %v981
      %1014 = vst [vmem:[%s6 + $0x38] sm:$0xff] %v982
      %1015 = vst [vmem:[%s6 + $0x40] sm:$0xff] %v983
      %1016 = vst [vmem:[%s6 + $0x48] sm:$0xff] %v984
      %1017 = vst [vmem:[%s6 + $0x50] sm:$0xff] %v985
      %1018 = vst [vmem:[%s6 + $0x58] sm:$0xff] %v986
      %1019 = vst [vmem:[%s6 + $0x60] sm:$0xff] %v987
      %1020 = vst [vmem:[%s6 + $0x68] sm:$0xff] %v988
      %1021 = vst [vmem:[%s6 + $0x70] sm:$0xff] %v989
      %1022 = vst [vmem:[%s6 + $0x78] sm:$0xff] %v990
      %1023 = vst [vmem:[%s6 + $0x80] sm:$0xff] %v991
      %1024 = vst [vmem:[%s6 + $0x88] sm:$0xff] %v992
      %1025 = vst [vmem:[%s6 + $0x90] sm:$0xff] %v993
      %1026 = vst [vmem:[%s6 + $0x98] sm:$0xff] %v994
      %1027 = vst [vmem:[%s6 + $0xa0] sm:$0xff] %v995
      %1028 = vst [vmem:[%s6 + $0xa8] sm:$0xff] %v996
      %1029 = vst [vmem:[%s6 + $0xb0] sm:$0xff] %v997
      %1030 = vst [vmem:[%s6 + $0xb8] sm:$0xff] %v998
      %1031 = vst [vmem:[%s6 + $0xc0] sm:$0xff] %v999
      %1032 = vst [vmem:[%s6 + $0xc8] sm:$0xff] %v1000
      %1033 = vst [vmem:[%s6 + $0xd0] sm:$0xff] %v1001
      %1034 = vst [vmem:[%s6 + $0xd8] sm:$0xff] %v1002
      %1035 = vst [vmem:[%s6 + $0xe0] sm:$0xff] %v1003
      %1036 = vst [vmem:[%s6 + $0xe8] sm:$0xff] %v1004
      %1037 = vst [vmem:[%s6 + $0xf0] sm:$0xff] %v1005
      %1038 = vst [vmem:[%s6 + $0xf8] sm:$0xff] %v1006
    $region25: #{lightgcn_forward.5} parent=1 // pred_fallthru
      _
    // Predicated region
    $region26: #{lightgcn_forward.5} parent=1 // pred_check
      _
    $region27: #{lightgcn_forward.5} parent=1 // pred_check_branch
      %1040 = sbr.rel (0) target = $region29
    $region28: #{lightgcn_forward.5} parent=1 // pred_region
      %s1042 = ssub.s32 4096, 4096
      %1043 = vsyncadd [#allocation3], %s1042
      %s1044 = sshll.u32 [#allocation2], 4
      %s1045 = int_to_ptr.vmem [resolvable:$true] %s1044
      %1050 = dma.vmem_to_hbm [thread:$0]  %s1045, 4096, %s4, [#allocation3], 128, 128, 8
    $region29: #{lightgcn_forward.5} parent=1 // pred_fallthru
      _
    // Predicated region
    $region30: #{lightgcn_forward.5} parent=1 // pred_check
      _
    $region31: #{lightgcn_forward.5} parent=1 // pred_check_branch
      %1052 = sbr.rel (0) target = $region33
    $region32: #{lightgcn_forward.5} parent=1 // pred_region
      %s1054 = ssub.s32 2048, 2048
      %1055 = vsyncadd [#allocation5], %s1054
      %s1056 = sshll.u32 [#allocation4], 4
      %s1057 = int_to_ptr.vmem [resolvable:$true] %s1056
      %1062 = dma.vmem_to_hbm [thread:$0]  %s1057, 2048, %s5, [#allocation5], 64, 64, 4
    $region33: #{lightgcn_forward.5} parent=1 // pred_fallthru
      _
    // Predicated region
    $region34: #{lightgcn_forward.5} parent=1 // pred_check
      _
    $region35: #{lightgcn_forward.5} parent=1 // pred_check_branch
      %1064 = sbr.rel (0) target = $region37
    $region36: #{lightgcn_forward.5} parent=1 // pred_region
      _
    $region37: #{lightgcn_forward.5} parent=1 // pred_fallthru
      _
    // Predicated region
    $region38: #{lightgcn_forward.5} parent=1 // pred_check
      _
    $region39: #{lightgcn_forward.5} parent=1 // pred_check_branch
      %1066 = sbr.rel (0) target = $region41
    $region40: #{lightgcn_forward.5} parent=1 // pred_region
      %1067 = dma.done [#allocation3], 4096
    $region41: #{lightgcn_forward.5} parent=1 // pred_fallthru
      _
    // Predicated region
    $region42: #{lightgcn_forward.5} parent=1 // pred_check
      _
    $region43: #{lightgcn_forward.5} parent=1 // pred_check_branch
      %1069 = sbr.rel (0) target = $region45
    $region44: #{lightgcn_forward.5} parent=1 // pred_region
      %1070 = dma.done [#allocation5], 2048
    $region45: #{lightgcn_forward.5} parent=1 // pred_fallthru
      _
    // Predicated region
    $region46: #{lightgcn_forward.5} parent=1 // pred_check
      _
    $region47: #{lightgcn_forward.5} parent=1 // pred_check_branch
      %1072 = sbr.rel (0) target = $region49
    $region48: #{lightgcn_forward.5} parent=1 // pred_region
      _
    $region49: #{lightgcn_forward.5} parent=1 // pred_fallthru
      _
    %1073 = vsyncpa [#allocation3], 1
    %1074 = vsyncpa [#allocation5], 1

</llo_original>
